<compile_context>
chip_gen: v7x
topology: tpu7x:2x2x1
jax: 0.10.0
libtpu: 0.0.40
codegen_flags: <defaults>
</compile_context>

<pallas_src>
import functools

import jax
import jax.numpy as jnp
from jax import lax
from jax.experimental import pallas as pl
from jax.experimental.pallas import tpu as pltpu


def _partial_conv_kernel(xms_ref, w_ref, b_ref, out_ref, keep_ref, *,
                         offsets, owide, cout):
    """Partial conv for one batch item (fused in-VMEM im2col).

    xms_ref : [Cin+1, Lflat]        padded+flattened (x*mask ; channel-summed mask)
    w_ref   : [KH*KW, Cout+1, Cin+1] per-tap weight, extended so row Cout /
                                     col Cin implement the all-ones mask conv
    b_ref   : [Cout, 1]             conv bias
    out_ref : [Cout, OWIDE]         NCHW-ordered wide output (OWIDE = OH_full*Wp)
    keep_ref: [1, OWIDE]            1.0 where mask_conv != 0 else 0.0
    """
    # Fused im2col: every conv tap is a lane-shifted window of the flat row
    # already sitting in VMEM -> the activation is read from HBM exactly once.
    acc = jnp.dot(w_ref[0], xms_ref[:, offsets[0]:offsets[0] + owide],
                  preferred_element_type=jnp.float32)            # [Cout+1, OWIDE]
    for kk in range(1, len(offsets)):
        off = offsets[kk]
        acc = acc + jnp.dot(w_ref[kk], xms_ref[:, off:off + owide],
                            preferred_element_type=jnp.float32)

    conv = acc[:cout, :]            # Conv2d(x*mask) without bias
    msum = acc[cout:cout + 1, :]    # Conv2d(mask) with all-ones weight
    holes = msum == 0.0
    # Exact reciprocal on a [1, OWIDE] row (cheap); pl.reciprocal(approx=True)
    # is an EUP-slot option if looser tolerance is acceptable.
    inv = 1.0 / jnp.where(holes, 1.0, msum)

    # (conv + b - b) / mask_sum + b  ==  conv * inv + b
    pre = conv * inv + b_ref[...]
    out_ref[...] = jnp.where(holes, 0.0, pre).astype(out_ref.dtype)
    keep_ref[...] = jnp.where(holes, 0.0, 1.0).astype(keep_ref.dtype)


@functools.partial(jax.jit, static_argnames=("stride", "padding", "dilation"))
def partial_conv(x, mask, weight, bias, *, stride=1, padding=0, dilation=1):
    """x, mask: [N, Cin, H, W] (NCHW); weight: [Cout, Cin, KH, KW]; bias: [Cout].

    Returns (output, new_mask), both [N, Cout, OH, OW] (NCHW), matching PyTorch.
    """
    # TODO(synk): groups != 1 (grouped conv) is not supported.
    n, cin, h, w = x.shape
    cout, _, kh, kw = weight.shape
    d = dilation
    hp, wp = h + 2 * padding, w + 2 * padding
    oh_full = hp - d * (kh - 1)                  # stride-1 output rows
    oh = (hp - d * (kh - 1) - 1) // stride + 1   # strided output rows
    ow = (wp - d * (kw - 1) - 1) // stride + 1   # strided output cols
    owide = oh_full * wp                         # wide (uncropped) spatial length
    lflat = hp * wp + d * (kw - 1)               # flat length incl. last-tap overrun

    # Single input stream: (x*mask) with the channel-summed mask appended as an
    # extra channel; padded spatially, flattened, tail-padded.  The mask conv
    # is folded into the same matmul via the extended weight below.
    xm_pad = jnp.pad(x * mask,
                     ((0, 0), (0, 0), (padding, padding), (padding, padding)))
    ms_pad = jnp.pad(jnp.sum(mask, axis=1, keepdims=True),
                     ((0, 0), (0, 0), (padding, padding), (padding, padding)))
    xms = jnp.concatenate([xm_pad, ms_pad], axis=1).astype(jnp.float32)
    xms_flat = xms.reshape(n, cin + 1, hp * wp)
    xms_flat = jnp.pad(xms_flat, ((0, 0), (0, 0), (0, lflat - hp * wp)))

    # Extended per-tap weight: [Cout+1, Cin+1]; row Cout / col Cin implement
    # mask_conv (all-ones weight applied to the channel-summed mask).  Exact
    # for binary masks (integer-valued sums), like the PyTorch reference.
    w_base = jnp.transpose(weight, (2, 3, 0, 1)).reshape(kh * kw, cout, cin)
    w_ext = jnp.zeros((kh * kw, cout + 1, cin + 1), jnp.float32)
    w_ext = w_ext.at[:, :cout, :cin].set(w_base.astype(jnp.float32))
    w_ext = w_ext.at[:, cout, cin].set(1.0)
    b2 = bias.reshape(cout, 1).astype(jnp.float32)

    # Static lane offsets of the KH*KW conv taps in the flattened padded image.
    # Note: the kernel computes the stride-1 wide conv; stride > 1 is handled
    # by subsampling below (overcompute, still exact).
    offsets = tuple(ikh * d * wp + ikw * d
                    for ikh in range(kh) for ikw in range(kw))

    kernel = functools.partial(_partial_conv_kernel,
                               offsets=offsets, owide=owide, cout=cout)

    # TODO(synk): for very large images, tile over output-row strips with a
    # manual halo DMA instead of one whole-image block per grid step.
    out_wide, keep_wide = pl.pallas_call(
        kernel,
        out_shape=(jax.ShapeDtypeStruct((n, cout, owide), jnp.float32),
                   jax.ShapeDtypeStruct((n, 1, owide), jnp.float32)),
        grid_spec=pltpu.PrefetchScalarGridSpec(
            num_scalar_prefetch=0,
            grid=(n,),
            in_specs=[
                pl.BlockSpec((None, cin + 1, lflat), lambda i: (i, 0, 0)),
                pl.BlockSpec((kh * kw, cout + 1, cin + 1), lambda i: (0, 0, 0)),
                pl.BlockSpec((cout, 1), lambda i: (0, 0)),
            ],
            out_specs=[
                pl.BlockSpec((None, cout, owide), lambda i: (i, 0, 0)),
                pl.BlockSpec((None, 1, owide), lambda i: (i, 0, 0)),
            ],
        ),
        compiler_params=pltpu.CompilerParams(
            dimension_semantics=("parallel",),
            vmem_limit_bytes=32 * 1024 * 1024,
        ),
    )(xms_flat, w_ext, b2)

    # Wide -> true output: reshape (free) + width/stride crop.  This is the
    # only extra HBM pass (~Wp/OW = 1.13x of the output bytes at stride 1).
    hs = slice(0, (oh - 1) * stride + 1, stride)
    ws = slice(0, (ow - 1) * stride + 1, stride)
    out = out_wide.reshape(n, cout, oh_full, wp)[:, :, hs, ws]
    keep = keep_wide.reshape(n, 1, oh_full, wp)[:, :, hs, ws]
    new_mask = jnp.broadcast_to(keep, (n, cout, oh, ow)).astype(out.dtype)
    return out, new_mask


def _reference_partial_conv(x, mask, weight, bias, *, stride, padding, dilation):
    """Pure-JAX reference mirroring the PyTorch module exactly (NCHW)."""
    dn = ("NCHW", "OIHW", "NCHW")
    conv = lambda inp, w: lax.conv_general_dilated(
        inp, w, window_strides=(stride, stride),
        padding=[(padding, padding), (padding, padding)],
        rhs_dilation=(dilation, dilation), dimension_numbers=dn)
    out = conv(x * mask, weight) + bias[None, :, None, None]
    out_bias = bias[None, :, None, None]
    out_mask = conv(mask, jnp.ones_like(weight))
    holes = out_mask == 0.0
    mask_sum = jnp.where(holes, 1.0, out_mask)
    pre = (out - out_bias) / mask_sum + out_bias
    out = jnp.where(holes, 0.0, pre)
    new_mask = jnp.where(holes, 0.0, 1.0)
    return out, jnp.broadcast_to(new_mask, out.shape)


if __name__ == "__main__":
    key = jax.random.PRNGKey(0)
    k_x, k_m, k_w = jax.random.split(key, 3)

    # Module config: PartialConv(in_channels=4, out_channels=4, kernel_size=3,
    #                            stride=1, padding=1, bias=True)
    N, Cin, H, W = 2, 4, 16, 16
    Cout, KH, KW = 4, 3, 3
    stride, padding, dilation = 1, 1, 1

    x = jax.random.normal(k_x, (N, Cin, H, W), dtype=jnp.float32)
    # Binary mask with a solid hole region so the holes path is exercised.
    mask = (jax.random.uniform(k_m, (N, Cin, H, W)) > 0.3).astype(jnp.float32)
    mask = mask.at[:, :, :6, :6].set(0.0)

    # Deterministic "kaiming" init: normal * sqrt(2 / fan_in); bias = 0
    # (weights_init('kaiming') sets input_conv bias to 0).
    fan_in = Cin * KH * KW
    weight = jax.random.normal(k_w, (Cout, Cin, KH, KW), dtype=jnp.float32) * jnp.sqrt(
        2.0 / fan_in)
    bias = jnp.zeros((Cout,), dtype=jnp.float32)

    out, new_mask = partial_conv(
        x, mask, weight, bias, stride=stride, padding=padding, dilation=dilation)
    jax.block_until_ready((out, new_mask))

    ref_out, ref_mask = _reference_partial_conv(
        x, mask, weight, bias, stride=stride, padding=padding, dilation=dilation)
    assert out.shape == (N, Cout, H, W) and new_mask.shape == (N, Cout, H, W)
    assert jnp.allclose(out, ref_out, atol=1e-4, rtol=1e-4)
    assert jnp.allclose(new_mask, ref_mask)

    print("KERNEL_OK")
</pallas_src>

<mosaic_0001>
module attributes {stable_mosaic.version = 11 : i64} {
  func.func @_partial_conv_kernel(%arg0: i32, %arg1: memref<1x5x326xf32, #tpu.memory_space<vmem>>, %arg2: memref<9x5x5xf32, #tpu.memory_space<vmem>>, %arg3: memref<4x1xf32, #tpu.memory_space<vmem>>, %arg4: memref<1x4x288xf32, #tpu.memory_space<vmem>>, %arg5: memref<1x1x288xf32, #tpu.memory_space<vmem>>) attributes {dimension_semantics = [#tpu.dimension_semantics<parallel>], iteration_bounds = array<i64: 2>, scalar_prefetch = 0 : i64, scratch_operands = 0 : i64, tpu.core_type = #tpu.core_type<tc>, window_params = [{transform_indices = @transform_0, window_bounds = array<i64: 1, 5, 326>}, {pipeline_mode = #tpu.pipeline_mode<synchronous>, transform_indices = @transform_1, window_bounds = array<i64: 9, 5, 5>}, {pipeline_mode = #tpu.pipeline_mode<synchronous>, transform_indices = @transform_2, window_bounds = array<i64: 4, 1>}, {transform_indices = @transform_3, window_bounds = array<i64: 1, 4, 288>}, {transform_indices = @transform_4, window_bounds = array<i64: 1, 1, 288>}]} {
    %c0 = arith.constant 0 : index
    %c0_0 = arith.constant 0 : index
    %c0_1 = arith.constant 0 : index
    %0 = vector.load %arg2[%c0, %c0_0, %c0_1] : memref<9x5x5xf32, #tpu.memory_space<vmem>>, vector<1x5x5xf32>
    %1 = vector.shape_cast %0 : vector<1x5x5xf32> to vector<5x5xf32>
    %c0_2 = arith.constant 0 : index
    %c0_3 = arith.constant 0 : index
    %c0_4 = arith.constant 0 : index
    %2 = vector.load %arg1[%c0_2, %c0_3, %c0_4] : memref<1x5x326xf32, #tpu.memory_space<vmem>>, vector<1x5x288xf32>
    %3 = vector.shape_cast %2 : vector<1x5x288xf32> to vector<5x288xf32>
    %cst = arith.constant dense<0.000000e+00> : vector<5x288xf32>
    %4 = tpu.matmul %1, %3, %cst {dimension_numbers = #tpu.dot_dimension_numbers<[1], [0], [0], [1], [0, 0, 1, 1], [], []>} : vector<5x5xf32>, vector<5x288xf32>, vector<5x288xf32> -> vector<5x288xf32>
    %c1 = arith.constant 1 : index
    %c0_5 = arith.constant 0 : index
    %c0_6 = arith.constant 0 : index
    %5 = vector.load %arg2[%c1, %c0_5, %c0_6] : memref<9x5x5xf32, #tpu.memory_space<vmem>>, vector<1x5x5xf32>
    %6 = vector.shape_cast %5 : vector<1x5x5xf32> to vector<5x5xf32>
    %c0_7 = arith.constant 0 : index
    %c0_8 = arith.constant 0 : index
    %c1_9 = arith.constant 1 : index
    %7 = vector.load %arg1[%c0_7, %c0_8, %c1_9] : memref<1x5x326xf32, #tpu.memory_space<vmem>>, vector<1x5x288xf32>
    %8 = vector.shape_cast %7 : vector<1x5x288xf32> to vector<5x288xf32>
    %cst_10 = arith.constant dense<0.000000e+00> : vector<5x288xf32>
    %9 = tpu.matmul %6, %8, %cst_10 {dimension_numbers = #tpu.dot_dimension_numbers<[1], [0], [0], [1], [0, 0, 1, 1], [], []>} : vector<5x5xf32>, vector<5x288xf32>, vector<5x288xf32> -> vector<5x288xf32>
    %10 = arith.addf %4, %9 : vector<5x288xf32>
    %c2 = arith.constant 2 : index
    %c0_11 = arith.constant 0 : index
    %c0_12 = arith.constant 0 : index
    %11 = vector.load %arg2[%c2, %c0_11, %c0_12] : memref<9x5x5xf32, #tpu.memory_space<vmem>>, vector<1x5x5xf32>
    %12 = vector.shape_cast %11 : vector<1x5x5xf32> to vector<5x5xf32>
    %c0_13 = arith.constant 0 : index
    %c0_14 = arith.constant 0 : index
    %c2_15 = arith.constant 2 : index
    %13 = vector.load %arg1[%c0_13, %c0_14, %c2_15] : memref<1x5x326xf32, #tpu.memory_space<vmem>>, vector<1x5x288xf32>
    %14 = vector.shape_cast %13 : vector<1x5x288xf32> to vector<5x288xf32>
    %cst_16 = arith.constant dense<0.000000e+00> : vector<5x288xf32>
    %15 = tpu.matmul %12, %14, %cst_16 {dimension_numbers = #tpu.dot_dimension_numbers<[1], [0], [0], [1], [0, 0, 1, 1], [], []>} : vector<5x5xf32>, vector<5x288xf32>, vector<5x288xf32> -> vector<5x288xf32>
    %16 = arith.addf %10, %15 : vector<5x288xf32>
    %c3 = arith.constant 3 : index
    %c0_17 = arith.constant 0 : index
    %c0_18 = arith.constant 0 : index
    %17 = vector.load %arg2[%c3, %c0_17, %c0_18] : memref<9x5x5xf32, #tpu.memory_space<vmem>>, vector<1x5x5xf32>
    %18 = vector.shape_cast %17 : vector<1x5x5xf32> to vector<5x5xf32>
    %c0_19 = arith.constant 0 : index
    %c0_20 = arith.constant 0 : index
    %c18 = arith.constant 18 : index
    %19 = vector.load %arg1[%c0_19, %c0_20, %c18] : memref<1x5x326xf32, #tpu.memory_space<vmem>>, vector<1x5x288xf32>
    %20 = vector.shape_cast %19 : vector<1x5x288xf32> to vector<5x288xf32>
    %cst_21 = arith.constant dense<0.000000e+00> : vector<5x288xf32>
    %21 = tpu.matmul %18, %20, %cst_21 {dimension_numbers = #tpu.dot_dimension_numbers<[1], [0], [0], [1], [0, 0, 1, 1], [], []>} : vector<5x5xf32>, vector<5x288xf32>, vector<5x288xf32> -> vector<5x288xf32>
    %22 = arith.addf %16, %21 : vector<5x288xf32>
    %c4 = arith.constant 4 : index
    %c0_22 = arith.constant 0 : index
    %c0_23 = arith.constant 0 : index
    %23 = vector.load %arg2[%c4, %c0_22, %c0_23] : memref<9x5x5xf32, #tpu.memory_space<vmem>>, vector<1x5x5xf32>
    %24 = vector.shape_cast %23 : vector<1x5x5xf32> to vector<5x5xf32>
    %c0_24 = arith.constant 0 : index
    %c0_25 = arith.constant 0 : index
    %c19 = arith.constant 19 : index
    %25 = vector.load %arg1[%c0_24, %c0_25, %c19] : memref<1x5x326xf32, #tpu.memory_space<vmem>>, vector<1x5x288xf32>
    %26 = vector.shape_cast %25 : vector<1x5x288xf32> to vector<5x288xf32>
    %cst_26 = arith.constant dense<0.000000e+00> : vector<5x288xf32>
    %27 = tpu.matmul %24, %26, %cst_26 {dimension_numbers = #tpu.dot_dimension_numbers<[1], [0], [0], [1], [0, 0, 1, 1], [], []>} : vector<5x5xf32>, vector<5x288xf32>, vector<5x288xf32> -> vector<5x288xf32>
    %28 = arith.addf %22, %27 : vector<5x288xf32>
    %c5 = arith.constant 5 : index
    %c0_27 = arith.constant 0 : index
    %c0_28 = arith.constant 0 : index
    %29 = vector.load %arg2[%c5, %c0_27, %c0_28] : memref<9x5x5xf32, #tpu.memory_space<vmem>>, vector<1x5x5xf32>
    %30 = vector.shape_cast %29 : vector<1x5x5xf32> to vector<5x5xf32>
    %c0_29 = arith.constant 0 : index
    %c0_30 = arith.constant 0 : index
    %c20 = arith.constant 20 : index
    %31 = vector.load %arg1[%c0_29, %c0_30, %c20] : memref<1x5x326xf32, #tpu.memory_space<vmem>>, vector<1x5x288xf32>
    %32 = vector.shape_cast %31 : vector<1x5x288xf32> to vector<5x288xf32>
    %cst_31 = arith.constant dense<0.000000e+00> : vector<5x288xf32>
    %33 = tpu.matmul %30, %32, %cst_31 {dimension_numbers = #tpu.dot_dimension_numbers<[1], [0], [0], [1], [0, 0, 1, 1], [], []>} : vector<5x5xf32>, vector<5x288xf32>, vector<5x288xf32> -> vector<5x288xf32>
    %34 = arith.addf %28, %33 : vector<5x288xf32>
    %c6 = arith.constant 6 : index
    %c0_32 = arith.constant 0 : index
    %c0_33 = arith.constant 0 : index
    %35 = vector.load %arg2[%c6, %c0_32, %c0_33] : memref<9x5x5xf32, #tpu.memory_space<vmem>>, vector<1x5x5xf32>
    %36 = vector.shape_cast %35 : vector<1x5x5xf32> to vector<5x5xf32>
    %c0_34 = arith.constant 0 : index
    %c0_35 = arith.constant 0 : index
    %c36 = arith.constant 36 : index
    %37 = vector.load %arg1[%c0_34, %c0_35, %c36] : memref<1x5x326xf32, #tpu.memory_space<vmem>>, vector<1x5x288xf32>
    %38 = vector.shape_cast %37 : vector<1x5x288xf32> to vector<5x288xf32>
    %cst_36 = arith.constant dense<0.000000e+00> : vector<5x288xf32>
    %39 = tpu.matmul %36, %38, %cst_36 {dimension_numbers = #tpu.dot_dimension_numbers<[1], [0], [0], [1], [0, 0, 1, 1], [], []>} : vector<5x5xf32>, vector<5x288xf32>, vector<5x288xf32> -> vector<5x288xf32>
    %40 = arith.addf %34, %39 : vector<5x288xf32>
    %c7 = arith.constant 7 : index
    %c0_37 = arith.constant 0 : index
    %c0_38 = arith.constant 0 : index
    %41 = vector.load %arg2[%c7, %c0_37, %c0_38] : memref<9x5x5xf32, #tpu.memory_space<vmem>>, vector<1x5x5xf32>
    %42 = vector.shape_cast %41 : vector<1x5x5xf32> to vector<5x5xf32>
    %c0_39 = arith.constant 0 : index
    %c0_40 = arith.constant 0 : index
    %c37 = arith.constant 37 : index
    %43 = vector.load %arg1[%c0_39, %c0_40, %c37] : memref<1x5x326xf32, #tpu.memory_space<vmem>>, vector<1x5x288xf32>
    %44 = vector.shape_cast %43 : vector<1x5x288xf32> to vector<5x288xf32>
    %cst_41 = arith.constant dense<0.000000e+00> : vector<5x288xf32>
    %45 = tpu.matmul %42, %44, %cst_41 {dimension_numbers = #tpu.dot_dimension_numbers<[1], [0], [0], [1], [0, 0, 1, 1], [], []>} : vector<5x5xf32>, vector<5x288xf32>, vector<5x288xf32> -> vector<5x288xf32>
    %46 = arith.addf %40, %45 : vector<5x288xf32>
    %c8 = arith.constant 8 : index
    %c0_42 = arith.constant 0 : index
    %c0_43 = arith.constant 0 : index
    %47 = vector.load %arg2[%c8, %c0_42, %c0_43] : memref<9x5x5xf32, #tpu.memory_space<vmem>>, vector<1x5x5xf32>
    %48 = vector.shape_cast %47 : vector<1x5x5xf32> to vector<5x5xf32>
    %c0_44 = arith.constant 0 : index
    %c0_45 = arith.constant 0 : index
    %c38 = arith.constant 38 : index
    %49 = vector.load %arg1[%c0_44, %c0_45, %c38] : memref<1x5x326xf32, #tpu.memory_space<vmem>>, vector<1x5x288xf32>
    %50 = vector.shape_cast %49 : vector<1x5x288xf32> to vector<5x288xf32>
    %cst_46 = arith.constant dense<0.000000e+00> : vector<5x288xf32>
    %51 = tpu.matmul %48, %50, %cst_46 {dimension_numbers = #tpu.dot_dimension_numbers<[1], [0], [0], [1], [0, 0, 1, 1], [], []>} : vector<5x5xf32>, vector<5x288xf32>, vector<5x288xf32> -> vector<5x288xf32>
    %52 = arith.addf %46, %51 : vector<5x288xf32>
    %53 = vector.extract_strided_slice %52 {offsets = [0, 0], sizes = [4, 288], strides = [1, 1]} : vector<5x288xf32> to vector<4x288xf32>
    %54 = vector.extract_strided_slice %52 {offsets = [4, 0], sizes = [1, 288], strides = [1, 1]} : vector<5x288xf32> to vector<1x288xf32>
    %cst_47 = arith.constant 0.000000e+00 : f32
    %55 = vector.broadcast %cst_47 : f32 to vector<1x288xf32>
    %56 = arith.cmpf oeq, %54, %55 : vector<1x288xf32>
    %cst_48 = arith.constant 1.000000e+00 : f32
    %57 = vector.broadcast %cst_48 : f32 to vector<1x288xf32>
    %58 = arith.select %56, %57, %54 : vector<1x288xi1>, vector<1x288xf32>
    %cst_49 = arith.constant 1.000000e+00 : f32
    %59 = vector.broadcast %cst_49 : f32 to vector<1x288xf32>
    %60 = arith.divf %59, %58 : vector<1x288xf32>
    %61 = vector.broadcast %60 : vector<1x288xf32> to vector<4x288xf32>
    %62 = arith.mulf %53, %61 : vector<4x288xf32>
    %c0_50 = arith.constant 0 : index
    %c0_51 = arith.constant 0 : index
    %63 = vector.load %arg3[%c0_50, %c0_51] : memref<4x1xf32, #tpu.memory_space<vmem>>, vector<4x1xf32>
    %64 = vector.broadcast %63 : vector<4x1xf32> to vector<4x288xf32>
    %65 = arith.addf %62, %64 : vector<4x288xf32>
    %cst_52 = arith.constant 0.000000e+00 : f32
    %66 = vector.shape_cast %56 : vector<1x288xi1> to vector<1x288xi1>
    %67 = vector.broadcast %66 : vector<1x288xi1> to vector<4x288xi1>
    %68 = vector.broadcast %cst_52 : f32 to vector<4x288xf32>
    %69 = arith.select %67, %68, %65 : vector<4x288xi1>, vector<4x288xf32>
    %c0_53 = arith.constant 0 : index
    %c0_54 = arith.constant 0 : index
    %c0_55 = arith.constant 0 : index
    %70 = vector.load %arg4[%c0_53, %c0_54, %c0_55] : memref<1x4x288xf32, #tpu.memory_space<vmem>>, vector<1x4x288xf32>
    %71 = vector.shape_cast %70 : vector<1x4x288xf32> to vector<4x288xf32>
    %72 = vector.shape_cast %69 : vector<4x288xf32> to vector<1x4x288xf32>
    tpu.vector_store %arg4[%c0_53, %c0_54, %c0_55], %72 {strides = array<i32>} : memref<1x4x288xf32, #tpu.memory_space<vmem>>, vector<1x4x288xf32>,
    %cst_56 = arith.constant 0.000000e+00 : f32
    %cst_57 = arith.constant 1.000000e+00 : f32
    %73 = vector.broadcast %cst_56 : f32 to vector<1x288xf32>
    %74 = vector.broadcast %cst_57 : f32 to vector<1x288xf32>
    %75 = arith.select %56, %73, %74 : vector<1x288xi1>, vector<1x288xf32>
    %c0_58 = arith.constant 0 : index
    %c0_59 = arith.constant 0 : index
    %c0_60 = arith.constant 0 : index
    %76 = vector.load %arg5[%c0_58, %c0_59, %c0_60] : memref<1x1x288xf32, #tpu.memory_space<vmem>>, vector<1x1x288xf32>
    %77 = vector.shape_cast %76 : vector<1x1x288xf32> to vector<1x288xf32>
    %78 = vector.shape_cast %75 : vector<1x288xf32> to vector<1x1x288xf32>
    tpu.vector_store %arg5[%c0_58, %c0_59, %c0_60], %78 {strides = array<i32>} : memref<1x1x288xf32, #tpu.memory_space<vmem>>, vector<1x1x288xf32>,
    return
  }
  func.func @transform_0(%arg0: i32) -> (i32, i32, i32) {
    %c0_i32 = arith.constant 0 : i32
    %c0_i32_0 = arith.constant 0 : i32
    %c0_i32_1 = arith.constant 0 : i32
    return %arg0, %c0_i32, %c0_i32_0 : i32, i32, i32
  }
  func.func @transform_1(%arg0: i32) -> (i32, i32, i32) {
    %c0_i32 = arith.constant 0 : i32
    %c0_i32_0 = arith.constant 0 : i32
    %c0_i32_1 = arith.constant 0 : i32
    %c0_i32_2 = arith.constant 0 : i32
    return %c0_i32, %c0_i32_0, %c0_i32_1 : i32, i32, i32
  }
  func.func @transform_2(%arg0: i32) -> (i32, i32) {
    %c0_i32 = arith.constant 0 : i32
    %c0_i32_0 = arith.constant 0 : i32
    %c0_i32_1 = arith.constant 0 : i32
    return %c0_i32, %c0_i32_0 : i32, i32
  }
  func.func @transform_3(%arg0: i32) -> (i32, i32, i32) {
    %c0_i32 = arith.constant 0 : i32
    %c0_i32_0 = arith.constant 0 : i32
    %c0_i32_1 = arith.constant 0 : i32
    return %arg0, %c0_i32, %c0_i32_0 : i32, i32, i32
  }
  func.func @transform_4(%arg0: i32) -> (i32, i32, i32) {
    %c0_i32 = arith.constant 0 : i32
    %c0_i32_0 = arith.constant 0 : i32
    %c0_i32_1 = arith.constant 0 : i32
    return %arg0, %c0_i32, %c0_i32_0 : i32, i32, i32
  }
}

</mosaic_0001>

<llo_original>
// kernel: partial_conv.1
$region0: #{partial_conv.1}
  #allocation0 [shape = 'u32[]', space=smem, size = 0x4, offset = 0x4, fixed_abs, tag = 'smem constant byte address 0x4 - core index']
  #allocation1 [shape = 'u32[144,128]{1,0:T(1,128)}', space=vmem, size = 0x12000, scoped, tag = 'internal scratch']
  %s0 = inlined_call_operand.vmem [shape: f32[2,5,326], index: 0, kind: input, shape index: {}]
  %s1 = inlined_call_operand.vmem [shape: f32[9,5,5], index: 1, kind: input, shape index: {}]
  %s2 = inlined_call_operand.vmem [shape: f32[4,1], index: 2, kind: input, shape index: {}]
  %s3 = inlined_call_operand.vmem [shape: f32[2,4,288], index: 3, kind: output, shape index: {0}]
  %s4 = inlined_call_operand.vmem [shape: f32[2,1,288], index: 4, kind: output, shape index: {1}]
  %5 = xla_tuple %s3, %s4
  %s6 = sld [smem:[#allocation0]]
  $region53: #{partial_conv.1} parent=0
    _
  %s8 = ssub.s32 1, %s6
  %s9 = scalar_select 0, %s8, %s6
  loop: start=0, step=1, limit=4
  $region2: #{partial_conv.1} parent=0 // loop_pre_header
    _
  $region3: #{partial_conv.1} parent=0 // loop_header
    %s11 = sphi 0, %s15
    %p12 = scmp.ge.s32.totalorder %s11, 4
    %s21 = sphi 0, %s23
    %s24 = sphi 0, %s21
    %s25 = sphi 0, %s24
    %s41 = sphi 0, %s25
    %s45 = sphi 0, %s45
    %s47 = sphi 0, %s45
    %s48 = sphi 0, %s47
    %s62 = sphi 0, %s48
    %s66 = sphi 0, %s66
    %s68 = sphi 0, %s66
    %s69 = sphi 0, %s68
    %s83 = sphi 0, %s69
    %s89 = sphi 0, %s91
    %s92 = sphi 0, %s89
    %s93 = sphi 0, %s92
    %s109 = sphi 0, %s93
    %s115 = sphi 0, %s117
    %s118 = sphi 0, %s115
    %s119 = sphi 0, %s118
    %s135 = sphi 0, %s119
  $region4: #{partial_conv.1} parent=0 // loop_header_branch
    %14 = sbr.rel (%p12) target = $region8
  $region5: #{partial_conv.1} parent=0 // loop_body
    %s16 = ssub.s32 %s11, 1
    %s17 = ssub.s32 %s11, 2
    %s18 = sadd.s32 %s11, 1
    %s19 = ssub.s32 %s11, %s18
    %p20 = scmp.eq.s32.totalorder %s19, 0
    %s22 = sadd.s32 %s21, 1
    %s23 = scalar_select %p20, %s21, %s22
    %p26 = pneg %p20
    %p27 = scmp.eq.s32.totalorder %s11, 1
    %p28 = por %p26, %p27
    %p29 = scmp.ne.s32.totalorder %s21, %s24
    %p30 = scmp.eq.s32.totalorder %s11, 0
    %p31 = por %p29, %p30
    %p32 = scmp.ne.s32.totalorder %s21, %s24
    %p33 = scmp.eq.s32.totalorder %s16, 1
    %p34 = por %p32, %p33
    %p35 = scmp.ne.s32.totalorder %s24, %s25
    %p36 = scmp.eq.s32.totalorder %s16, 0
    %p37 = por %p35, %p36
    %p38 = scmp.ne.s32.totalorder %s24, %s25
    %p39 = scmp.eq.s32.totalorder %s17, 1
    %p40 = por %p38, %p39
    %p42 = scmp.ne.s32.totalorder %s25, %s41
    %p43 = scmp.eq.s32.totalorder %s17, 0
    %p44 = por %p42, %p43
    %s46 = sadd.s32 %s45, 1
    %p49 = scmp.eq.s32.totalorder %s11, 1
    %p50 = scmp.ne.s32.totalorder %s45, %s47
    %p51 = scmp.eq.s32.totalorder %s11, 0
    %p52 = por %p50, %p51
    %p53 = scmp.ne.s32.totalorder %s45, %s47
    %p54 = scmp.eq.s32.totalorder %s16, 1
    %p55 = por %p53, %p54
    %p56 = scmp.ne.s32.totalorder %s47, %s48
    %p57 = scmp.eq.s32.totalorder %s16, 0
    %p58 = por %p56, %p57
    %p59 = scmp.ne.s32.totalorder %s47, %s48
    %p60 = scmp.eq.s32.totalorder %s17, 1
    %p61 = por %p59, %p60
    %p63 = scmp.ne.s32.totalorder %s48, %s62
    %p64 = scmp.eq.s32.totalorder %s17, 0
    %p65 = por %p63, %p64
    %s67 = sadd.s32 %s66, 1
    %p70 = scmp.eq.s32.totalorder %s11, 1
    %p71 = scmp.ne.s32.totalorder %s66, %s68
    %p72 = scmp.eq.s32.totalorder %s11, 0
    %p73 = por %p71, %p72
    %p74 = scmp.ne.s32.totalorder %s66, %s68
    %p75 = scmp.eq.s32.totalorder %s16, 1
    %p76 = por %p74, %p75
    %p77 = scmp.ne.s32.totalorder %s68, %s69
    %p78 = scmp.eq.s32.totalorder %s16, 0
    %p79 = por %p77, %p78
    %p80 = scmp.ne.s32.totalorder %s68, %s69
    %p81 = scmp.eq.s32.totalorder %s17, 1
    %p82 = por %p80, %p81
    %p84 = scmp.ne.s32.totalorder %s69, %s83
    %p85 = scmp.eq.s32.totalorder %s17, 0
    %p86 = por %p84, %p85
    %s87 = ssub.s32 %s11, %s18
    %p88 = scmp.eq.s32.totalorder %s87, 0
    %s90 = sadd.s32 %s89, 1
    %s91 = scalar_select %p88, %s89, %s90
    %p94 = pneg %p88
    %p95 = scmp.eq.s32.totalorder %s11, 1
    %p96 = por %p94, %p95
    %p97 = scmp.ne.s32.totalorder %s89, %s92
    %p98 = scmp.eq.s32.totalorder %s11, 0
    %p99 = por %p97, %p98
    %p100 = scmp.ne.s32.totalorder %s89, %s92
    %p101 = scmp.eq.s32.totalorder %s16, 1
    %p102 = por %p100, %p101
    %p103 = scmp.ne.s32.totalorder %s92, %s93
    %p104 = scmp.eq.s32.totalorder %s16, 0
    %p105 = por %p103, %p104
    %p106 = scmp.ne.s32.totalorder %s92, %s93
    %p107 = scmp.eq.s32.totalorder %s17, 1
    %p108 = por %p106, %p107
    %p110 = scmp.ne.s32.totalorder %s93, %s109
    %p111 = scmp.eq.s32.totalorder %s17, 0
    %p112 = por %p110, %p111
    %s113 = ssub.s32 %s11, %s18
    %p114 = scmp.eq.s32.totalorder %s113, 0
    %s116 = sadd.s32 %s115, 1
    %s117 = scalar_select %p114, %s115, %s116
    %p120 = pneg %p114
    %p121 = scmp.eq.s32.totalorder %s11, 1
    %p122 = por %p120, %p121
    %p123 = scmp.ne.s32.totalorder %s115, %s118
    %p124 = scmp.eq.s32.totalorder %s11, 0
    %p125 = por %p123, %p124
    %p126 = scmp.ne.s32.totalorder %s115, %s118
    %p127 = scmp.eq.s32.totalorder %s16, 1
    %p128 = por %p126, %p127
    %p129 = scmp.ne.s32.totalorder %s118, %s119
    %p130 = scmp.eq.s32.totalorder %s16, 0
    %p131 = por %p129, %p130
    %p132 = scmp.ne.s32.totalorder %s118, %s119
    %p133 = scmp.eq.s32.totalorder %s17, 1
    %p134 = por %p132, %p133
    %p136 = scmp.ne.s32.totalorder %s119, %s135
    %p137 = scmp.eq.s32.totalorder %s17, 0
    %p138 = por %p136, %p137
    %p139 = scmp.le.s32.totalorder 1, %s11
    %p140 = scmp.lt.s32.totalorder %s11, 3
    %p141 = pnand %p139, %p140
    %p142 = pneg %p141
    // Predicated region
    $region9: #{partial_conv.1} parent=5 // pred_check
      _
    $region10: #{partial_conv.1} parent=5 // pred_check_branch
      %144 = sbr.rel (%p141) target = $region12
    $region11: #{partial_conv.1} parent=5 // pred_region
      %s145 = ssub.s32 %s11, 1
      // Predicated region
      $region13: #{partial_conv.1} parent=11 // pred_check
        %p146 = pneg %p58
      $region14: #{partial_conv.1} parent=11 // pred_check_branch
        %148 = sbr.rel (%p146) target = $region16
      $region15: #{partial_conv.1} parent=11 // pred_region
        _
      $region16: #{partial_conv.1} parent=11 // pred_fallthru
        _
      // Predicated region
      $region17: #{partial_conv.1} parent=11 // pred_check
        %p149 = pneg %p79
      $region18: #{partial_conv.1} parent=11 // pred_check_branch
        %151 = sbr.rel (%p149) target = $region20
      $region19: #{partial_conv.1} parent=11 // pred_region
        _
      $region20: #{partial_conv.1} parent=11 // pred_fallthru
        _
    $region12: #{partial_conv.1} parent=5 // pred_fallthru
      _
    %p152 = scmp.lt.s32.totalorder %s11, 2
    // Predicated region
    $region21: #{partial_conv.1} parent=5 // pred_check
      %p153 = pneg %p152
    $region22: #{partial_conv.1} parent=5 // pred_check_branch
      %155 = sbr.rel (%p153) target = $region24
    $region23: #{partial_conv.1} parent=5 // pred_region
      // Predicated region
      $region25: #{partial_conv.1} parent=23 // pred_check
        %p156 = pneg %p31
      $region26: #{partial_conv.1} parent=23 // pred_check_branch
        %158 = sbr.rel (%p156) target = $region28
      $region27: #{partial_conv.1} parent=23 // pred_region
        %p159 = scmp.lt.s32.totalorder %s11, 1
        %s160 = scalar_select %p159, %s11, 1
        %s161 = smul.addr %s160, 3
        %s162 = smul.addr %s161, 8
        %s163 = scalar_lea.vmem %s0, %s162
      $region28: #{partial_conv.1} parent=23 // pred_fallthru
        _
    $region24: #{partial_conv.1} parent=5 // pred_fallthru
      _
    %p164 = scmp.le.s32.totalorder 1, %s11
    %p165 = scmp.lt.s32.totalorder %s11, 3
    %p166 = pnand %p164, %p165
    %p167 = pneg %p166
    // Predicated region
    $region29: #{partial_conv.1} parent=5 // pred_check
      _
    $region30: #{partial_conv.1} parent=5 // pred_check_branch
      %169 = sbr.rel (%p166) target = $region32
    $region31: #{partial_conv.1} parent=5 // pred_region
      %s170 = ssub.s32 %s11, 1
      %p171 = scmp.lt.s32.totalorder %s16, 1
      %s172 = scalar_select %p171, %s16, 1
      %s173 = smul.addr %s172, 3
      %s174 = smul.addr %s173, 8
      %s175 = scalar_lea.vmem %s0, %s174
      %p176 = pneg %p37
      %p177 = pneg %p34
      %p178 = pneg %p58
      %p179 = pneg %p55
      %p180 = pneg %p79
      %p181 = pneg %p76
      %p182 = pneg %p105
      %p183 = pneg %p102
      %p184 = scmp.lt.s32.totalorder %s16, 1
      %s185 = scalar_select %p184, %s16, 1
      %s186 = smul.addr %s185, 3
      %s187 = smul.addr %s186, 4
      %s188 = scalar_lea.vmem %s3, %s187
      %p189 = pneg %p131
      %p190 = pneg %p128
      %p191 = scmp.lt.s32.totalorder %s16, 1
      %s192 = scalar_select %p191, %s16, 1
      %s193 = smul.addr %s192, 3
      %s194 = scalar_lea.vmem %s4, %s193
      %p195 = scmp.lt.s32.totalorder %s16, 1
      %s196 = scalar_select %p195, %s16, 1
      %s197 = smul.addr %s196, 3
      %s198 = smul.addr %s197, 8
      %s199 = scalar_lea.vmem %s0, %s198
      %p200 = scmp.lt.s32.totalorder %s16, 1
      %s201 = scalar_select %p200, %s16, 1
      %s202 = smul.addr %s201, 3
      %s203 = smul.addr %s202, 4
      %s204 = scalar_lea.vmem %s3, %s203
      %p205 = scmp.lt.s32.totalorder %s16, 1
      %s206 = scalar_select %p205, %s16, 1
      %s207 = smul.addr %s206, 3
      %s208 = scalar_lea.vmem %s4, %s207
      %v209 = vld [vmem:[%s1] sm:$0x1f]
      %v210 = vld [vmem:[%s199] sm:$0x1f]
      %v211 = vld [vmem:[%s199 + $0x8] sm:$0x1f]
      %v212 = vld [vmem:[%s199 + $0x10] sm:$0x1f]
      %s213 = scalar_lea.vmem %s1, 8
      %v214 = vld [vmem:[%s213] sm:$0x1f]
      %218 = vrot.lane.b32.xlu0 %v210, 127
      %v219 = vpop.permute.xlu0 %218
      %220 = vrot.lane.b32.xlu0 %v211, 127
      %v221 = vpop.permute.xlu0 %220
      %222 = vrot.lane.b32.xlu0 %v212, 127
      %v223 = vpop.permute.xlu0 %222
      %vm224 = vcmask 1039360
      %v225 = vsel %vm224, %v219, %v221
      %v226 = vsel %vm224, %v221, %v223
      %vm227 = vcmask 39936
      %v229 = vsel %vm227, %v214, 0
      %vm231 = vcmask 1044480
      %v232 = vsel %vm231, %v225, 0
      %v234 = vsel %vm231, %v226, 0
      %v236 = vsel %vm231, %v223, 0
      %238 = vmatprep.subr.mxu0 %v234
      %239 = vmatpush1.msra.mxu0 %v232
      %240 = vmatprep.subr.mxu0 0.0
      %241 = vmatpush1.msra.mxu0 0.0
      %242 = vmatprep.subr.mxu0 0.0
      %243 = vmatpush1.msra.mxu0 0.0
      %244 = vmatprep.subr.mxu0 0.0
      %245 = vmatpush1.msra.mxu0 0.0
      %246 = vmatprep.subr.mxu0 0.0
      %247 = vmatpush1.msra.mxu0 0.0
      %248 = vmatprep.subr.mxu0 0.0
      %249 = vmatpush1.msra.mxu0 0.0
      %250 = vmatprep.subr.mxu0 0.0
      %251 = vmatpush1.msra.mxu0 0.0
      %252 = vmatprep.subr.mxu0 0.0
      %253 = vmatpush1.msra.mxu0 0.0
      %254 = vmatprep.subr.mxu0 0.0
      %255 = vmatpush1.msra.mxu0 0.0
      %256 = vmatprep.subr.mxu0 0.0
      %257 = vmatpush1.msra.mxu0 0.0
      %258 = vmatprep.subr.mxu0 0.0
      %259 = vmatpush1.msra.mxu0 0.0
      %260 = vmatprep.subr.mxu0 0.0
      %261 = vmatpush1.msra.mxu0 0.0
      %262 = vmatprep.subr.mxu0 0.0
      %263 = vmatpush1.msra.mxu0 0.0
      %264 = vmatprep.subr.mxu0 0.0
      %265 = vmatpush1.msra.mxu0 0.0
      %266 = vmatprep.subr.mxu0 0.0
      %267 = vmatpush1.msra.mxu0 0.0
      %268 = vmatprep.subr.mxu0 0.0
      %269 = vmatpush1.msra.mxu0 0.0
      %270 = vmatprep.subr.mxu0 0.0
      %271 = vmatpush1.msra.mxu0 0.0
      %272 = vmatprep.subr.mxu0 0.0
      %273 = vmatpush1.msra.mxu0 0.0
      %274 = vmatprep.subr.mxu0 0.0
      %275 = vmatpush1.msra.mxu0 0.0
      %276 = vmatprep.subr.mxu0 0.0
      %277 = vmatpush1.msra.mxu0 0.0
      %278 = vmatprep.subr.mxu0 0.0
      %279 = vmatpush1.msra.mxu0 0.0
      %280 = vmatprep.subr.mxu0 0.0
      %281 = vmatpush1.msra.mxu0 0.0
      %282 = vmatprep.subr.mxu0 0.0
      %283 = vmatpush1.msra.mxu0 0.0
      %284 = vmatprep.subr.mxu0 0.0
      %285 = vmatpush1.msra.mxu0 0.0
      %286 = vmatprep.subr.mxu0 0.0
      %287 = vmatpush1.msra.mxu0 0.0
      %288 = vmatprep.subr.mxu0 0.0
      %289 = vmatpush1.msra.mxu0 0.0
      %290 = vmatprep.subr.mxu0 0.0
      %291 = vmatpush1.msra.mxu0 0.0
      %292 = vmatprep.subr.mxu0 0.0
      %293 = vmatpush1.msra.mxu0 0.0
      %294 = vmatprep.subr.mxu0 0.0
      %295 = vmatpush1.msra.mxu0 0.0
      %296 = vmatprep.subr.mxu0 0.0
      %297 = vmatpush1.msra.mxu0 0.0
      %298 = vmatprep.subr.mxu0 0.0
      %299 = vmatpush1.msra.mxu0 0.0
      %300 = vmatprep.subr.mxu0 0.0
      %301 = vmatpush1.msra.mxu0 0.0
      %302 = vmatprep.mubr.f32.mxu0 0.0
      %303 = vmatmul.mubr.f32.gmra.mrb[0].mxu0 %v229
      %v304 = vpop.f32.mrb[0].mxu0
      %v305 = vadd.f32 0.0, %v304
      %v306 = vpop.f32.mrb[0].mxu0
      %v307 = vadd.f32 0.0, %v306
      %308 = vdwg.mxu0
      %309 = vmatprep.subr.mxu0 0.0
      %310 = vmatpush1.msra.mxu0 %v236
      %311 = vmatprep.subr.mxu0 0.0
      %312 = vmatpush1.msra.mxu0 0.0
      %313 = vmatprep.subr.mxu0 0.0
      %314 = vmatpush1.msra.mxu0 0.0
      %315 = vmatprep.subr.mxu0 0.0
      %316 = vmatpush1.msra.mxu0 0.0
      %317 = vmatprep.subr.mxu0 0.0
      %318 = vmatpush1.msra.mxu0 0.0
      %319 = vmatprep.subr.mxu0 0.0
      %320 = vmatpush1.msra.mxu0 0.0
      %321 = vmatprep.subr.mxu0 0.0
      %322 = vmatpush1.msra.mxu0 0.0
      %323 = vmatprep.subr.mxu0 0.0
      %324 = vmatpush1.msra.mxu0 0.0
      %325 = vmatprep.subr.mxu0 0.0
      %326 = vmatpush1.msra.mxu0 0.0
      %327 = vmatprep.subr.mxu0 0.0
      %328 = vmatpush1.msra.mxu0 0.0
      %329 = vmatprep.subr.mxu0 0.0
      %330 = vmatpush1.msra.mxu0 0.0
      %331 = vmatprep.subr.mxu0 0.0
      %332 = vmatpush1.msra.mxu0 0.0
      %333 = vmatprep.subr.mxu0 0.0
      %334 = vmatpush1.msra.mxu0 0.0
      %335 = vmatprep.subr.mxu0 0.0
      %336 = vmatpush1.msra.mxu0 0.0
      %337 = vmatprep.subr.mxu0 0.0
      %338 = vmatpush1.msra.mxu0 0.0
      %339 = vmatprep.subr.mxu0 0.0
      %340 = vmatpush1.msra.mxu0 0.0
      %341 = vmatprep.subr.mxu0 0.0
      %342 = vmatpush1.msra.mxu0 0.0
      %343 = vmatprep.subr.mxu0 0.0
      %344 = vmatpush1.msra.mxu0 0.0
      %345 = vmatprep.subr.mxu0 0.0
      %346 = vmatpush1.msra.mxu0 0.0
      %347 = vmatprep.subr.mxu0 0.0
      %348 = vmatpush1.msra.mxu0 0.0
      %349 = vmatprep.subr.mxu0 0.0
      %350 = vmatpush1.msra.mxu0 0.0
      %351 = vmatprep.subr.mxu0 0.0
      %352 = vmatpush1.msra.mxu0 0.0
      %353 = vmatprep.subr.mxu0 0.0
      %354 = vmatpush1.msra.mxu0 0.0
      %355 = vmatprep.subr.mxu0 0.0
      %356 = vmatpush1.msra.mxu0 0.0
      %357 = vmatprep.subr.mxu0 0.0
      %358 = vmatpush1.msra.mxu0 0.0
      %359 = vmatprep.subr.mxu0 0.0
      %360 = vmatpush1.msra.mxu0 0.0
      %361 = vmatprep.subr.mxu0 0.0
      %362 = vmatpush1.msra.mxu0 0.0
      %363 = vmatprep.subr.mxu0 0.0
      %364 = vmatpush1.msra.mxu0 0.0
      %365 = vmatprep.subr.mxu0 0.0
      %366 = vmatpush1.msra.mxu0 0.0
      %367 = vmatprep.subr.mxu0 0.0
      %368 = vmatpush1.msra.mxu0 0.0
      %369 = vmatprep.subr.mxu0 0.0
      %370 = vmatpush1.msra.mxu0 0.0
      %371 = vmatprep.subr.mxu0 0.0
      %372 = vmatpush1.msra.mxu0 0.0
      %373 = vmatprep.mubr.f32.mxu0 0.0
      %374 = vmatmul.mubr.f32.gmra.mrb[0].mxu0 %v229
      %v375 = vpop.f32.mrb[0].mxu0
      %v376 = vadd.f32 0.0, %v375
      %v377 = vpop.f32.mrb[0].mxu0
      %378 = vdwg.mxu0
      %v380 = vsel %vm227, %v209, 0
      %v382 = vsel %vm231, %v210, 0
      %v384 = vsel %vm231, %v211, 0
      %v386 = vsel %vm231, %v212, 0
      %388 = vmatprep.subr.mxu0 %v384
      %389 = vmatpush1.msra.mxu0 %v382
      %390 = vmatprep.subr.mxu0 0.0
      %391 = vmatpush1.msra.mxu0 0.0
      %392 = vmatprep.subr.mxu0 0.0
      %393 = vmatpush1.msra.mxu0 0.0
      %394 = vmatprep.subr.mxu0 0.0
      %395 = vmatpush1.msra.mxu0 0.0
      %396 = vmatprep.subr.mxu0 0.0
      %397 = vmatpush1.msra.mxu0 0.0
      %398 = vmatprep.subr.mxu0 0.0
      %399 = vmatpush1.msra.mxu0 0.0
      %400 = vmatprep.subr.mxu0 0.0
      %401 = vmatpush1.msra.mxu0 0.0
      %402 = vmatprep.subr.mxu0 0.0
      %403 = vmatpush1.msra.mxu0 0.0
      %404 = vmatprep.subr.mxu0 0.0
      %405 = vmatpush1.msra.mxu0 0.0
      %406 = vmatprep.subr.mxu0 0.0
      %407 = vmatpush1.msra.mxu0 0.0
      %408 = vmatprep.subr.mxu0 0.0
      %409 = vmatpush1.msra.mxu0 0.0
      %410 = vmatprep.subr.mxu0 0.0
      %411 = vmatpush1.msra.mxu0 0.0
      %412 = vmatprep.subr.mxu0 0.0
      %413 = vmatpush1.msra.mxu0 0.0
      %414 = vmatprep.subr.mxu0 0.0
      %415 = vmatpush1.msra.mxu0 0.0
      %416 = vmatprep.subr.mxu0 0.0
      %417 = vmatpush1.msra.mxu0 0.0
      %418 = vmatprep.subr.mxu0 0.0
      %419 = vmatpush1.msra.mxu0 0.0
      %420 = vmatprep.subr.mxu0 0.0
      %421 = vmatpush1.msra.mxu0 0.0
      %422 = vmatprep.subr.mxu0 0.0
      %423 = vmatpush1.msra.mxu0 0.0
      %424 = vmatprep.subr.mxu0 0.0
      %425 = vmatpush1.msra.mxu0 0.0
      %426 = vmatprep.subr.mxu0 0.0
      %427 = vmatpush1.msra.mxu0 0.0
      %428 = vmatprep.subr.mxu0 0.0
      %429 = vmatpush1.msra.mxu0 0.0
      %430 = vmatprep.subr.mxu0 0.0
      %431 = vmatpush1.msra.mxu0 0.0
      %432 = vmatprep.subr.mxu0 0.0
      %433 = vmatpush1.msra.mxu0 0.0
      %434 = vmatprep.subr.mxu0 0.0
      %435 = vmatpush1.msra.mxu0 0.0
      %436 = vmatprep.subr.mxu0 0.0
      %437 = vmatpush1.msra.mxu0 0.0
      %438 = vmatprep.subr.mxu0 0.0
      %439 = vmatpush1.msra.mxu0 0.0
      %440 = vmatprep.subr.mxu0 0.0
      %441 = vmatpush1.msra.mxu0 0.0
      %442 = vmatprep.subr.mxu0 0.0
      %443 = vmatpush1.msra.mxu0 0.0
      %444 = vmatprep.subr.mxu0 0.0
      %445 = vmatpush1.msra.mxu0 0.0
      %446 = vmatprep.subr.mxu0 0.0
      %447 = vmatpush1.msra.mxu0 0.0
      %448 = vmatprep.subr.mxu0 0.0
      %449 = vmatpush1.msra.mxu0 0.0
      %450 = vmatprep.subr.mxu0 0.0
      %451 = vmatpush1.msra.mxu0 0.0
      %452 = vmatprep.mubr.f32.mxu0 0.0
      %453 = vmatmul.mubr.f32.gmra.mrb[0].mxu0 %v380
      %v454 = vpop.f32.mrb[0].mxu0
      %v455 = vadd.f32 %v305, %v454
      %v456 = vpop.f32.mrb[0].mxu0
      %v457 = vadd.f32 %v307, %v456
      %458 = vdwg.mxu0
      %459 = vmatprep.subr.mxu0 0.0
      %460 = vmatpush1.msra.mxu0 %v386
      %461 = vmatprep.subr.mxu0 0.0
      %462 = vmatpush1.msra.mxu0 0.0
      %463 = vmatprep.subr.mxu0 0.0
      %464 = vmatpush1.msra.mxu0 0.0
      %465 = vmatprep.subr.mxu0 0.0
      %466 = vmatpush1.msra.mxu0 0.0
      %467 = vmatprep.subr.mxu0 0.0
      %468 = vmatpush1.msra.mxu0 0.0
      %469 = vmatprep.subr.mxu0 0.0
      %470 = vmatpush1.msra.mxu0 0.0
      %471 = vmatprep.subr.mxu0 0.0
      %472 = vmatpush1.msra.mxu0 0.0
      %473 = vmatprep.subr.mxu0 0.0
      %474 = vmatpush1.msra.mxu0 0.0
      %475 = vmatprep.subr.mxu0 0.0
      %476 = vmatpush1.msra.mxu0 0.0
      %477 = vmatprep.subr.mxu0 0.0
      %478 = vmatpush1.msra.mxu0 0.0
      %479 = vmatprep.subr.mxu0 0.0
      %480 = vmatpush1.msra.mxu0 0.0
      %481 = vmatprep.subr.mxu0 0.0
      %482 = vmatpush1.msra.mxu0 0.0
      %483 = vmatprep.subr.mxu0 0.0
      %484 = vmatpush1.msra.mxu0 0.0
      %485 = vmatprep.subr.mxu0 0.0
      %486 = vmatpush1.msra.mxu0 0.0
      %487 = vmatprep.subr.mxu0 0.0
      %488 = vmatpush1.msra.mxu0 0.0
      %489 = vmatprep.subr.mxu0 0.0
      %490 = vmatpush1.msra.mxu0 0.0
      %491 = vmatprep.subr.mxu0 0.0
      %492 = vmatpush1.msra.mxu0 0.0
      %493 = vmatprep.subr.mxu0 0.0
      %494 = vmatpush1.msra.mxu0 0.0
      %495 = vmatprep.subr.mxu0 0.0
      %496 = vmatpush1.msra.mxu0 0.0
      %497 = vmatprep.subr.mxu0 0.0
      %498 = vmatpush1.msra.mxu0 0.0
      %499 = vmatprep.subr.mxu0 0.0
      %500 = vmatpush1.msra.mxu0 0.0
      %501 = vmatprep.subr.mxu0 0.0
      %502 = vmatpush1.msra.mxu0 0.0
      %503 = vmatprep.subr.mxu0 0.0
      %504 = vmatpush1.msra.mxu0 0.0
      %505 = vmatprep.subr.mxu0 0.0
      %506 = vmatpush1.msra.mxu0 0.0
      %507 = vmatprep.subr.mxu0 0.0
      %508 = vmatpush1.msra.mxu0 0.0
      %509 = vmatprep.subr.mxu0 0.0
      %510 = vmatpush1.msra.mxu0 0.0
      %511 = vmatprep.subr.mxu0 0.0
      %512 = vmatpush1.msra.mxu0 0.0
      %513 = vmatprep.subr.mxu0 0.0
      %514 = vmatpush1.msra.mxu0 0.0
      %515 = vmatprep.subr.mxu0 0.0
      %516 = vmatpush1.msra.mxu0 0.0
      %517 = vmatprep.subr.mxu0 0.0
      %518 = vmatpush1.msra.mxu0 0.0
      %519 = vmatprep.subr.mxu0 0.0
      %520 = vmatpush1.msra.mxu0 0.0
      %521 = vmatprep.subr.mxu0 0.0
      %522 = vmatpush1.msra.mxu0 0.0
      %523 = vmatprep.mubr.f32.mxu0 0.0
      %524 = vmatmul.mubr.f32.gmra.mrb[0].mxu0 %v380
      %v525 = vpop.f32.mrb[0].mxu0
      %v526 = vadd.f32 %v376, %v525
      %v527 = vpop.f32.mrb[0].mxu0
      %528 = vdwg.mxu0
      %s529 = scalar_lea.vmem %s1, 16
      %v530 = vld [vmem:[%s529] sm:$0x1f]
      %531 = vrot.lane.b32.xlu0 %v210, 126
      %v532 = vpop.permute.xlu0 %531
      %533 = vrot.lane.b32.xlu0 %v211, 126
      %v534 = vpop.permute.xlu0 %533
      %535 = vrot.lane.b32.xlu0 %v212, 126
      %v536 = vpop.permute.xlu0 %535
      %vm537 = vcmask 1031168
      %v538 = vsel %vm537, %v532, %v534
      %v539 = vsel %vm537, %v534, %v536
      %v541 = vsel %vm227, %v530, 0
      %v543 = vsel %vm231, %v538, 0
      %v545 = vsel %vm231, %v539, 0
      %v547 = vsel %vm231, %v536, 0
      %549 = vmatprep.subr.mxu0 %v545
      %550 = vmatpush1.msra.mxu0 %v543
      %551 = vmatprep.subr.mxu0 0.0
      %552 = vmatpush1.msra.mxu0 0.0
      %553 = vmatprep.subr.mxu0 0.0
      %554 = vmatpush1.msra.mxu0 0.0
      %555 = vmatprep.subr.mxu0 0.0
      %556 = vmatpush1.msra.mxu0 0.0
      %557 = vmatprep.subr.mxu0 0.0
      %558 = vmatpush1.msra.mxu0 0.0
      %559 = vmatprep.subr.mxu0 0.0
      %560 = vmatpush1.msra.mxu0 0.0
      %561 = vmatprep.subr.mxu0 0.0
      %562 = vmatpush1.msra.mxu0 0.0
      %563 = vmatprep.subr.mxu0 0.0
      %564 = vmatpush1.msra.mxu0 0.0
      %565 = vmatprep.subr.mxu0 0.0
      %566 = vmatpush1.msra.mxu0 0.0
      %567 = vmatprep.subr.mxu0 0.0
      %568 = vmatpush1.msra.mxu0 0.0
      %569 = vmatprep.subr.mxu0 0.0
      %570 = vmatpush1.msra.mxu0 0.0
      %571 = vmatprep.subr.mxu0 0.0
      %572 = vmatpush1.msra.mxu0 0.0
      %573 = vmatprep.subr.mxu0 0.0
      %574 = vmatpush1.msra.mxu0 0.0
      %575 = vmatprep.subr.mxu0 0.0
      %576 = vmatpush1.msra.mxu0 0.0
      %577 = vmatprep.subr.mxu0 0.0
      %578 = vmatpush1.msra.mxu0 0.0
      %579 = vmatprep.subr.mxu0 0.0
      %580 = vmatpush1.msra.mxu0 0.0
      %581 = vmatprep.subr.mxu0 0.0
      %582 = vmatpush1.msra.mxu0 0.0
      %583 = vmatprep.subr.mxu0 0.0
      %584 = vmatpush1.msra.mxu0 0.0
      %585 = vmatprep.subr.mxu0 0.0
      %586 = vmatpush1.msra.mxu0 0.0
      %587 = vmatprep.subr.mxu0 0.0
      %588 = vmatpush1.msra.mxu0 0.0
      %589 = vmatprep.subr.mxu0 0.0
      %590 = vmatpush1.msra.mxu0 0.0
      %591 = vmatprep.subr.mxu0 0.0
      %592 = vmatpush1.msra.mxu0 0.0
      %593 = vmatprep.subr.mxu0 0.0
      %594 = vmatpush1.msra.mxu0 0.0
      %595 = vmatprep.subr.mxu0 0.0
      %596 = vmatpush1.msra.mxu0 0.0
      %597 = vmatprep.subr.mxu0 0.0
      %598 = vmatpush1.msra.mxu0 0.0
      %599 = vmatprep.subr.mxu0 0.0
      %600 = vmatpush1.msra.mxu0 0.0
      %601 = vmatprep.subr.mxu0 0.0
      %602 = vmatpush1.msra.mxu0 0.0
      %603 = vmatprep.subr.mxu0 0.0
      %604 = vmatpush1.msra.mxu0 0.0
      %605 = vmatprep.subr.mxu0 0.0
      %606 = vmatpush1.msra.mxu0 0.0
      %607 = vmatprep.subr.mxu0 0.0
      %608 = vmatpush1.msra.mxu0 0.0
      %609 = vmatprep.subr.mxu0 0.0
      %610 = vmatpush1.msra.mxu0 0.0
      %611 = vmatprep.subr.mxu0 0.0
      %612 = vmatpush1.msra.mxu0 0.0
      %613 = vmatprep.mubr.f32.mxu0 0.0
      %614 = vmatmul.mubr.f32.gmra.mrb[0].mxu0 %v541
      %v615 = vpop.f32.mrb[0].mxu0
      %v616 = vadd.f32 0.0, %v615
      %v617 = vpop.f32.mrb[0].mxu0
      %v618 = vadd.f32 0.0, %v617
      %619 = vdwg.mxu0
      %620 = vmatprep.subr.mxu0 0.0
      %621 = vmatpush1.msra.mxu0 %v547
      %622 = vmatprep.subr.mxu0 0.0
      %623 = vmatpush1.msra.mxu0 0.0
      %624 = vmatprep.subr.mxu0 0.0
      %625 = vmatpush1.msra.mxu0 0.0
      %626 = vmatprep.subr.mxu0 0.0
      %627 = vmatpush1.msra.mxu0 0.0
      %628 = vmatprep.subr.mxu0 0.0
      %629 = vmatpush1.msra.mxu0 0.0
      %630 = vmatprep.subr.mxu0 0.0
      %631 = vmatpush1.msra.mxu0 0.0
      %632 = vmatprep.subr.mxu0 0.0
      %633 = vmatpush1.msra.mxu0 0.0
      %634 = vmatprep.subr.mxu0 0.0
      %635 = vmatpush1.msra.mxu0 0.0
      %636 = vmatprep.subr.mxu0 0.0
      %637 = vmatpush1.msra.mxu0 0.0
      %638 = vmatprep.subr.mxu0 0.0
      %639 = vmatpush1.msra.mxu0 0.0
      %640 = vmatprep.subr.mxu0 0.0
      %641 = vmatpush1.msra.mxu0 0.0
      %642 = vmatprep.subr.mxu0 0.0
      %643 = vmatpush1.msra.mxu0 0.0
      %644 = vmatprep.subr.mxu0 0.0
      %645 = vmatpush1.msra.mxu0 0.0
      %646 = vmatprep.subr.mxu0 0.0
      %647 = vmatpush1.msra.mxu0 0.0
      %648 = vmatprep.subr.mxu0 0.0
      %649 = vmatpush1.msra.mxu0 0.0
      %650 = vmatprep.subr.mxu0 0.0
      %651 = vmatpush1.msra.mxu0 0.0
      %652 = vmatprep.subr.mxu0 0.0
      %653 = vmatpush1.msra.mxu0 0.0
      %654 = vmatprep.subr.mxu0 0.0
      %655 = vmatpush1.msra.mxu0 0.0
      %656 = vmatprep.subr.mxu0 0.0
      %657 = vmatpush1.msra.mxu0 0.0
      %658 = vmatprep.subr.mxu0 0.0
      %659 = vmatpush1.msra.mxu0 0.0
      %660 = vmatprep.subr.mxu0 0.0
      %661 = vmatpush1.msra.mxu0 0.0
      %662 = vmatprep.subr.mxu0 0.0
      %663 = vmatpush1.msra.mxu0 0.0
      %664 = vmatprep.subr.mxu0 0.0
      %665 = vmatpush1.msra.mxu0 0.0
      %666 = vmatprep.subr.mxu0 0.0
      %667 = vmatpush1.msra.mxu0 0.0
      %668 = vmatprep.subr.mxu0 0.0
      %669 = vmatpush1.msra.mxu0 0.0
      %670 = vmatprep.subr.mxu0 0.0
      %671 = vmatpush1.msra.mxu0 0.0
      %672 = vmatprep.subr.mxu0 0.0
      %673 = vmatpush1.msra.mxu0 0.0
      %674 = vmatprep.subr.mxu0 0.0
      %675 = vmatpush1.msra.mxu0 0.0
      %676 = vmatprep.subr.mxu0 0.0
      %677 = vmatpush1.msra.mxu0 0.0
      %678 = vmatprep.subr.mxu0 0.0
      %679 = vmatpush1.msra.mxu0 0.0
      %680 = vmatprep.subr.mxu0 0.0
      %681 = vmatpush1.msra.mxu0 0.0
      %682 = vmatprep.subr.mxu0 0.0
      %683 = vmatpush1.msra.mxu0 0.0
      %684 = vmatprep.mubr.f32.mxu0 0.0
      %685 = vmatmul.mubr.f32.gmra.mrb[0].mxu0 %v541
      %v686 = vpop.f32.mrb[0].mxu0
      %v687 = vadd.f32 0.0, %v686
      %v688 = vpop.f32.mrb[0].mxu0
      %689 = vdwg.mxu0
      %v690 = vadd.f32 %v455, %v616
      %v691 = vadd.f32 %v457, %v618
      %v692 = vadd.f32 %v526, %v687
      %s693 = scalar_lea.vmem %s1, 24
      %v694 = vld [vmem:[%s693] sm:$0x1f]
      %695 = vrot.lane.b32.xlu0 %v210, 110
      %v696 = vpop.permute.xlu0 %695
      %697 = vrot.lane.b32.xlu0 %v211, 110
      %v698 = vpop.permute.xlu0 %697
      %699 = vrot.lane.b32.xlu0 %v212, 110
      %v700 = vpop.permute.xlu0 %699
      %vm701 = vcmask 900096
      %v702 = vsel %vm701, %v696, %v698
      %v703 = vsel %vm701, %v698, %v700
      %v705 = vsel %vm227, %v694, 0
      %v707 = vsel %vm231, %v702, 0
      %v709 = vsel %vm231, %v703, 0
      %v711 = vsel %vm231, %v700, 0
      %713 = vmatprep.subr.mxu0 %v709
      %714 = vmatpush1.msra.mxu0 %v707
      %715 = vmatprep.subr.mxu0 0.0
      %716 = vmatpush1.msra.mxu0 0.0
      %717 = vmatprep.subr.mxu0 0.0
      %718 = vmatpush1.msra.mxu0 0.0
      %719 = vmatprep.subr.mxu0 0.0
      %720 = vmatpush1.msra.mxu0 0.0
      %721 = vmatprep.subr.mxu0 0.0
      %722 = vmatpush1.msra.mxu0 0.0
      %723 = vmatprep.subr.mxu0 0.0
      %724 = vmatpush1.msra.mxu0 0.0
      %725 = vmatprep.subr.mxu0 0.0
      %726 = vmatpush1.msra.mxu0 0.0
      %727 = vmatprep.subr.mxu0 0.0
      %728 = vmatpush1.msra.mxu0 0.0
      %729 = vmatprep.subr.mxu0 0.0
      %730 = vmatpush1.msra.mxu0 0.0
      %731 = vmatprep.subr.mxu0 0.0
      %732 = vmatpush1.msra.mxu0 0.0
      %733 = vmatprep.subr.mxu0 0.0
      %734 = vmatpush1.msra.mxu0 0.0
      %735 = vmatprep.subr.mxu0 0.0
      %736 = vmatpush1.msra.mxu0 0.0
      %737 = vmatprep.subr.mxu0 0.0
      %738 = vmatpush1.msra.mxu0 0.0
      %739 = vmatprep.subr.mxu0 0.0
      %740 = vmatpush1.msra.mxu0 0.0
      %741 = vmatprep.subr.mxu0 0.0
      %742 = vmatpush1.msra.mxu0 0.0
      %743 = vmatprep.subr.mxu0 0.0
      %744 = vmatpush1.msra.mxu0 0.0
      %745 = vmatprep.subr.mxu0 0.0
      %746 = vmatpush1.msra.mxu0 0.0
      %747 = vmatprep.subr.mxu0 0.0
      %748 = vmatpush1.msra.mxu0 0.0
      %749 = vmatprep.subr.mxu0 0.0
      %750 = vmatpush1.msra.mxu0 0.0
      %751 = vmatprep.subr.mxu0 0.0
      %752 = vmatpush1.msra.mxu0 0.0
      %753 = vmatprep.subr.mxu0 0.0
      %754 = vmatpush1.msra.mxu0 0.0
      %755 = vmatprep.subr.mxu0 0.0
      %756 = vmatpush1.msra.mxu0 0.0
      %757 = vmatprep.subr.mxu0 0.0
      %758 = vmatpush1.msra.mxu0 0.0
      %759 = vmatprep.subr.mxu0 0.0
      %760 = vmatpush1.msra.mxu0 0.0
      %761 = vmatprep.subr.mxu0 0.0
      %762 = vmatpush1.msra.mxu0 0.0
      %763 = vmatprep.subr.mxu0 0.0
      %764 = vmatpush1.msra.mxu0 0.0
      %765 = vmatprep.subr.mxu0 0.0
      %766 = vmatpush1.msra.mxu0 0.0
      %767 = vmatprep.subr.mxu0 0.0
      %768 = vmatpush1.msra.mxu0 0.0
      %769 = vmatprep.subr.mxu0 0.0
      %770 = vmatpush1.msra.mxu0 0.0
      %771 = vmatprep.subr.mxu0 0.0
      %772 = vmatpush1.msra.mxu0 0.0
      %773 = vmatprep.subr.mxu0 0.0
      %774 = vmatpush1.msra.mxu0 0.0
      %775 = vmatprep.subr.mxu0 0.0
      %776 = vmatpush1.msra.mxu0 0.0
      %777 = vmatprep.mubr.f32.mxu0 0.0
      %778 = vmatmul.mubr.f32.gmra.mrb[0].mxu0 %v705
      %v779 = vpop.f32.mrb[0].mxu0
      %v780 = vadd.f32 0.0, %v779
      %v781 = vpop.f32.mrb[0].mxu0
      %v782 = vadd.f32 0.0, %v781
      %783 = vdwg.mxu0
      %784 = vmatprep.subr.mxu0 0.0
      %785 = vmatpush1.msra.mxu0 %v711
      %786 = vmatprep.subr.mxu0 0.0
      %787 = vmatpush1.msra.mxu0 0.0
      %788 = vmatprep.subr.mxu0 0.0
      %789 = vmatpush1.msra.mxu0 0.0
      %790 = vmatprep.subr.mxu0 0.0
      %791 = vmatpush1.msra.mxu0 0.0
      %792 = vmatprep.subr.mxu0 0.0
      %793 = vmatpush1.msra.mxu0 0.0
      %794 = vmatprep.subr.mxu0 0.0
      %795 = vmatpush1.msra.mxu0 0.0
      %796 = vmatprep.subr.mxu0 0.0
      %797 = vmatpush1.msra.mxu0 0.0
      %798 = vmatprep.subr.mxu0 0.0
      %799 = vmatpush1.msra.mxu0 0.0
      %800 = vmatprep.subr.mxu0 0.0
      %801 = vmatpush1.msra.mxu0 0.0
      %802 = vmatprep.subr.mxu0 0.0
      %803 = vmatpush1.msra.mxu0 0.0
      %804 = vmatprep.subr.mxu0 0.0
      %805 = vmatpush1.msra.mxu0 0.0
      %806 = vmatprep.subr.mxu0 0.0
      %807 = vmatpush1.msra.mxu0 0.0
      %808 = vmatprep.subr.mxu0 0.0
      %809 = vmatpush1.msra.mxu0 0.0
      %810 = vmatprep.subr.mxu0 0.0
      %811 = vmatpush1.msra.mxu0 0.0
      %812 = vmatprep.subr.mxu0 0.0
      %813 = vmatpush1.msra.mxu0 0.0
      %814 = vmatprep.subr.mxu0 0.0
      %815 = vmatpush1.msra.mxu0 0.0
      %816 = vmatprep.subr.mxu0 0.0
      %817 = vmatpush1.msra.mxu0 0.0
      %818 = vmatprep.subr.mxu0 0.0
      %819 = vmatpush1.msra.mxu0 0.0
      %820 = vmatprep.subr.mxu0 0.0
      %821 = vmatpush1.msra.mxu0 0.0
      %822 = vmatprep.subr.mxu0 0.0
      %823 = vmatpush1.msra.mxu0 0.0
      %824 = vmatprep.subr.mxu0 0.0
      %825 = vmatpush1.msra.mxu0 0.0
      %826 = vmatprep.subr.mxu0 0.0
      %827 = vmatpush1.msra.mxu0 0.0
      %828 = vmatprep.subr.mxu0 0.0
      %829 = vmatpush1.msra.mxu0 0.0
      %830 = vmatprep.subr.mxu0 0.0
      %831 = vmatpush1.msra.mxu0 0.0
      %832 = vmatprep.subr.mxu0 0.0
      %833 = vmatpush1.msra.mxu0 0.0
      %834 = vmatprep.subr.mxu0 0.0
      %835 = vmatpush1.msra.mxu0 0.0
      %836 = vmatprep.subr.mxu0 0.0
      %837 = vmatpush1.msra.mxu0 0.0
      %838 = vmatprep.subr.mxu0 0.0
      %839 = vmatpush1.msra.mxu0 0.0
      %840 = vmatprep.subr.mxu0 0.0
      %841 = vmatpush1.msra.mxu0 0.0
      %842 = vmatprep.subr.mxu0 0.0
      %843 = vmatpush1.msra.mxu0 0.0
      %844 = vmatprep.subr.mxu0 0.0
      %845 = vmatpush1.msra.mxu0 0.0
      %846 = vmatprep.subr.mxu0 0.0
      %847 = vmatpush1.msra.mxu0 0.0
      %848 = vmatprep.mubr.f32.mxu0 0.0
      %849 = vmatmul.mubr.f32.gmra.mrb[0].mxu0 %v705
      %v850 = vpop.f32.mrb[0].mxu0
      %v851 = vadd.f32 0.0, %v850
      %v852 = vpop.f32.mrb[0].mxu0
      %853 = vdwg.mxu0
      %v854 = vadd.f32 %v690, %v780
      %v855 = vadd.f32 %v691, %v782
      %v856 = vadd.f32 %v692, %v851
      %s857 = scalar_lea.vmem %s1, 32
      %v858 = vld [vmem:[%s857] sm:$0x1f]
      %859 = vrot.lane.b32.xlu0 %v210, 109
      %v860 = vpop.permute.xlu0 %859
      %861 = vrot.lane.b32.xlu0 %v211, 109
      %v862 = vpop.permute.xlu0 %861
      %863 = vrot.lane.b32.xlu0 %v212, 109
      %v864 = vpop.permute.xlu0 %863
      %vm865 = vcmask 891904
      %v866 = vsel %vm865, %v860, %v862
      %v867 = vsel %vm865, %v862, %v864
      %v869 = vsel %vm227, %v858, 0
      %v871 = vsel %vm231, %v866, 0
      %v873 = vsel %vm231, %v867, 0
      %v875 = vsel %vm231, %v864, 0
      %877 = vmatprep.subr.mxu0 %v873
      %878 = vmatpush1.msra.mxu0 %v871
      %879 = vmatprep.subr.mxu0 0.0
      %880 = vmatpush1.msra.mxu0 0.0
      %881 = vmatprep.subr.mxu0 0.0
      %882 = vmatpush1.msra.mxu0 0.0
      %883 = vmatprep.subr.mxu0 0.0
      %884 = vmatpush1.msra.mxu0 0.0
      %885 = vmatprep.subr.mxu0 0.0
      %886 = vmatpush1.msra.mxu0 0.0
      %887 = vmatprep.subr.mxu0 0.0
      %888 = vmatpush1.msra.mxu0 0.0
      %889 = vmatprep.subr.mxu0 0.0
      %890 = vmatpush1.msra.mxu0 0.0
      %891 = vmatprep.subr.mxu0 0.0
      %892 = vmatpush1.msra.mxu0 0.0
      %893 = vmatprep.subr.mxu0 0.0
      %894 = vmatpush1.msra.mxu0 0.0
      %895 = vmatprep.subr.mxu0 0.0
      %896 = vmatpush1.msra.mxu0 0.0
      %897 = vmatprep.subr.mxu0 0.0
      %898 = vmatpush1.msra.mxu0 0.0
      %899 = vmatprep.subr.mxu0 0.0
      %900 = vmatpush1.msra.mxu0 0.0
      %901 = vmatprep.subr.mxu0 0.0
      %902 = vmatpush1.msra.mxu0 0.0
      %903 = vmatprep.subr.mxu0 0.0
      %904 = vmatpush1.msra.mxu0 0.0
      %905 = vmatprep.subr.mxu0 0.0
      %906 = vmatpush1.msra.mxu0 0.0
      %907 = vmatprep.subr.mxu0 0.0
      %908 = vmatpush1.msra.mxu0 0.0
      %909 = vmatprep.subr.mxu0 0.0
      %910 = vmatpush1.msra.mxu0 0.0
      %911 = vmatprep.subr.mxu0 0.0
      %912 = vmatpush1.msra.mxu0 0.0
      %913 = vmatprep.subr.mxu0 0.0
      %914 = vmatpush1.msra.mxu0 0.0
      %915 = vmatprep.subr.mxu0 0.0
      %916 = vmatpush1.msra.mxu0 0.0
      %917 = vmatprep.subr.mxu0 0.0
      %918 = vmatpush1.msra.mxu0 0.0
      %919 = vmatprep.subr.mxu0 0.0
      %920 = vmatpush1.msra.mxu0 0.0
      %921 = vmatprep.subr.mxu0 0.0
      %922 = vmatpush1.msra.mxu0 0.0
      %923 = vmatprep.subr.mxu0 0.0
      %924 = vmatpush1.msra.mxu0 0.0
      %925 = vmatprep.subr.mxu0 0.0
      %926 = vmatpush1.msra.mxu0 0.0
      %927 = vmatprep.subr.mxu0 0.0
      %928 = vmatpush1.msra.mxu0 0.0
      %929 = vmatprep.subr.mxu0 0.0
      %930 = vmatpush1.msra.mxu0 0.0
      %931 = vmatprep.subr.mxu0 0.0
      %932 = vmatpush1.msra.mxu0 0.0
      %933 = vmatprep.subr.mxu0 0.0
      %934 = vmatpush1.msra.mxu0 0.0
      %935 = vmatprep.subr.mxu0 0.0
      %936 = vmatpush1.msra.mxu0 0.0
      %937 = vmatprep.subr.mxu0 0.0
      %938 = vmatpush1.msra.mxu0 0.0
      %939 = vmatprep.subr.mxu0 0.0
      %940 = vmatpush1.msra.mxu0 0.0
      %941 = vmatprep.mubr.f32.mxu0 0.0
      %942 = vmatmul.mubr.f32.gmra.mrb[0].mxu0 %v869
      %v943 = vpop.f32.mrb[0].mxu0
      %v944 = vadd.f32 0.0, %v943
      %v945 = vpop.f32.mrb[0].mxu0
      %v946 = vadd.f32 0.0, %v945
      %947 = vdwg.mxu0
      %948 = vmatprep.subr.mxu0 0.0
      %949 = vmatpush1.msra.mxu0 %v875
      %950 = vmatprep.subr.mxu0 0.0
      %951 = vmatpush1.msra.mxu0 0.0
      %952 = vmatprep.subr.mxu0 0.0
      %953 = vmatpush1.msra.mxu0 0.0
      %954 = vmatprep.subr.mxu0 0.0
      %955 = vmatpush1.msra.mxu0 0.0
      %956 = vmatprep.subr.mxu0 0.0
      %957 = vmatpush1.msra.mxu0 0.0
      %958 = vmatprep.subr.mxu0 0.0
      %959 = vmatpush1.msra.mxu0 0.0
      %960 = vmatprep.subr.mxu0 0.0
      %961 = vmatpush1.msra.mxu0 0.0
      %962 = vmatprep.subr.mxu0 0.0
      %963 = vmatpush1.msra.mxu0 0.0
      %964 = vmatprep.subr.mxu0 0.0
      %965 = vmatpush1.msra.mxu0 0.0
      %966 = vmatprep.subr.mxu0 0.0
      %967 = vmatpush1.msra.mxu0 0.0
      %968 = vmatprep.subr.mxu0 0.0
      %969 = vmatpush1.msra.mxu0 0.0
      %970 = vmatprep.subr.mxu0 0.0
      %971 = vmatpush1.msra.mxu0 0.0
      %972 = vmatprep.subr.mxu0 0.0
      %973 = vmatpush1.msra.mxu0 0.0
      %974 = vmatprep.subr.mxu0 0.0
      %975 = vmatpush1.msra.mxu0 0.0
      %976 = vmatprep.subr.mxu0 0.0
      %977 = vmatpush1.msra.mxu0 0.0
      %978 = vmatprep.subr.mxu0 0.0
      %979 = vmatpush1.msra.mxu0 0.0
      %980 = vmatprep.subr.mxu0 0.0
      %981 = vmatpush1.msra.mxu0 0.0
      %982 = vmatprep.subr.mxu0 0.0
      %983 = vmatpush1.msra.mxu0 0.0
      %984 = vmatprep.subr.mxu0 0.0
      %985 = vmatpush1.msra.mxu0 0.0
      %986 = vmatprep.subr.mxu0 0.0
      %987 = vmatpush1.msra.mxu0 0.0
      %988 = vmatprep.subr.mxu0 0.0
      %989 = vmatpush1.msra.mxu0 0.0
      %990 = vmatprep.subr.mxu0 0.0
      %991 = vmatpush1.msra.mxu0 0.0
      %992 = vmatprep.subr.mxu0 0.0
      %993 = vmatpush1.msra.mxu0 0.0
      %994 = vmatprep.subr.mxu0 0.0
      %995 = vmatpush1.msra.mxu0 0.0
      %996 = vmatprep.subr.mxu0 0.0
      %997 = vmatpush1.msra.mxu0 0.0
      %998 = vmatprep.subr.mxu0 0.0
      %999 = vmatpush1.msra.mxu0 0.0
      %1000 = vmatprep.subr.mxu0 0.0
      %1001 = vmatpush1.msra.mxu0 0.0
      %1002 = vmatprep.subr.mxu0 0.0
      %1003 = vmatpush1.msra.mxu0 0.0
      %1004 = vmatprep.subr.mxu0 0.0
      %1005 = vmatpush1.msra.mxu0 0.0
      %1006 = vmatprep.subr.mxu0 0.0
      %1007 = vmatpush1.msra.mxu0 0.0
      %1008 = vmatprep.subr.mxu0 0.0
      %1009 = vmatpush1.msra.mxu0 0.0
      %1010 = vmatprep.subr.mxu0 0.0
      %1011 = vmatpush1.msra.mxu0 0.0
      %1012 = vmatprep.mubr.f32.mxu0 0.0
      %1013 = vmatmul.mubr.f32.gmra.mrb[0].mxu0 %v869
      %v1014 = vpop.f32.mrb[0].mxu0
      %v1015 = vadd.f32 0.0, %v1014
      %v1016 = vpop.f32.mrb[0].mxu0
      %1017 = vdwg.mxu0
      %v1018 = vadd.f32 %v854, %v944
      %v1019 = vadd.f32 %v855, %v946
      %v1020 = vadd.f32 %v856, %v1015
      %s1021 = scalar_lea.vmem %s1, 40
      %v1022 = vld [vmem:[%s1021] sm:$0x1f]
      %1023 = vrot.lane.b32.xlu0 %v210, 108
      %v1024 = vpop.permute.xlu0 %1023
      %1025 = vrot.lane.b32.xlu0 %v211, 108
      %v1026 = vpop.permute.xlu0 %1025
      %1027 = vrot.lane.b32.xlu0 %v212, 108
      %v1028 = vpop.permute.xlu0 %1027
      %vm1029 = vcmask 883712
      %v1030 = vsel %vm1029, %v1024, %v1026
      %v1031 = vsel %vm1029, %v1026, %v1028
      %v1033 = vsel %vm227, %v1022, 0
      %v1035 = vsel %vm231, %v1030, 0
      %v1037 = vsel %vm231, %v1031, 0
      %v1039 = vsel %vm231, %v1028, 0
      %1041 = vmatprep.subr.mxu0 %v1037
      %1042 = vmatpush1.msra.mxu0 %v1035
      %1043 = vmatprep.subr.mxu0 0.0
      %1044 = vmatpush1.msra.mxu0 0.0
      %1045 = vmatprep.subr.mxu0 0.0
      %1046 = vmatpush1.msra.mxu0 0.0
      %1047 = vmatprep.subr.mxu0 0.0
      %1048 = vmatpush1.msra.mxu0 0.0
      %1049 = vmatprep.subr.mxu0 0.0
      %1050 = vmatpush1.msra.mxu0 0.0
      %1051 = vmatprep.subr.mxu0 0.0
      %1052 = vmatpush1.msra.mxu0 0.0
      %1053 = vmatprep.subr.mxu0 0.0
      %1054 = vmatpush1.msra.mxu0 0.0
      %1055 = vmatprep.subr.mxu0 0.0
      %1056 = vmatpush1.msra.mxu0 0.0
      %1057 = vmatprep.subr.mxu0 0.0
      %1058 = vmatpush1.msra.mxu0 0.0
      %1059 = vmatprep.subr.mxu0 0.0
      %1060 = vmatpush1.msra.mxu0 0.0
      %1061 = vmatprep.subr.mxu0 0.0
      %1062 = vmatpush1.msra.mxu0 0.0
      %1063 = vmatprep.subr.mxu0 0.0
      %1064 = vmatpush1.msra.mxu0 0.0
      %1065 = vmatprep.subr.mxu0 0.0
      %1066 = vmatpush1.msra.mxu0 0.0
      %1067 = vmatprep.subr.mxu0 0.0
      %1068 = vmatpush1.msra.mxu0 0.0
      %1069 = vmatprep.subr.mxu0 0.0
      %1070 = vmatpush1.msra.mxu0 0.0
      %1071 = vmatprep.subr.mxu0 0.0
      %1072 = vmatpush1.msra.mxu0 0.0
      %1073 = vmatprep.subr.mxu0 0.0
      %1074 = vmatpush1.msra.mxu0 0.0
      %1075 = vmatprep.subr.mxu0 0.0
      %1076 = vmatpush1.msra.mxu0 0.0
      %1077 = vmatprep.subr.mxu0 0.0
      %1078 = vmatpush1.msra.mxu0 0.0
      %1079 = vmatprep.subr.mxu0 0.0
      %1080 = vmatpush1.msra.mxu0 0.0
      %1081 = vmatprep.subr.mxu0 0.0
      %1082 = vmatpush1.msra.mxu0 0.0
      %1083 = vmatprep.subr.mxu0 0.0
      %1084 = vmatpush1.msra.mxu0 0.0
      %1085 = vmatprep.subr.mxu0 0.0
      %1086 = vmatpush1.msra.mxu0 0.0
      %1087 = vmatprep.subr.mxu0 0.0
      %1088 = vmatpush1.msra.mxu0 0.0
      %1089 = vmatprep.subr.mxu0 0.0
      %1090 = vmatpush1.msra.mxu0 0.0
      %1091 = vmatprep.subr.mxu0 0.0
      %1092 = vmatpush1.msra.mxu0 0.0
      %1093 = vmatprep.subr.mxu0 0.0
      %1094 = vmatpush1.msra.mxu0 0.0
      %1095 = vmatprep.subr.mxu0 0.0
      %1096 = vmatpush1.msra.mxu0 0.0
      %1097 = vmatprep.subr.mxu0 0.0
      %1098 = vmatpush1.msra.mxu0 0.0
      %1099 = vmatprep.subr.mxu0 0.0
      %1100 = vmatpush1.msra.mxu0 0.0
      %1101 = vmatprep.subr.mxu0 0.0
      %1102 = vmatpush1.msra.mxu0 0.0
      %1103 = vmatprep.subr.mxu0 0.0
      %1104 = vmatpush1.msra.mxu0 0.0
      %1105 = vmatprep.mubr.f32.mxu0 0.0
      %1106 = vmatmul.mubr.f32.gmra.mrb[0].mxu0 %v1033
      %v1107 = vpop.f32.mrb[0].mxu0
      %v1108 = vadd.f32 0.0, %v1107
      %v1109 = vpop.f32.mrb[0].mxu0
      %v1110 = vadd.f32 0.0, %v1109
      %1111 = vdwg.mxu0
      %1112 = vmatprep.subr.mxu0 0.0
      %1113 = vmatpush1.msra.mxu0 %v1039
      %1114 = vmatprep.subr.mxu0 0.0
      %1115 = vmatpush1.msra.mxu0 0.0
      %1116 = vmatprep.subr.mxu0 0.0
      %1117 = vmatpush1.msra.mxu0 0.0
      %1118 = vmatprep.subr.mxu0 0.0
      %1119 = vmatpush1.msra.mxu0 0.0
      %1120 = vmatprep.subr.mxu0 0.0
      %1121 = vmatpush1.msra.mxu0 0.0
      %1122 = vmatprep.subr.mxu0 0.0
      %1123 = vmatpush1.msra.mxu0 0.0
      %1124 = vmatprep.subr.mxu0 0.0
      %1125 = vmatpush1.msra.mxu0 0.0
      %1126 = vmatprep.subr.mxu0 0.0
      %1127 = vmatpush1.msra.mxu0 0.0
      %1128 = vmatprep.subr.mxu0 0.0
      %1129 = vmatpush1.msra.mxu0 0.0
      %1130 = vmatprep.subr.mxu0 0.0
      %1131 = vmatpush1.msra.mxu0 0.0
      %1132 = vmatprep.subr.mxu0 0.0
      %1133 = vmatpush1.msra.mxu0 0.0
      %1134 = vmatprep.subr.mxu0 0.0
      %1135 = vmatpush1.msra.mxu0 0.0
      %1136 = vmatprep.subr.mxu0 0.0
      %1137 = vmatpush1.msra.mxu0 0.0
      %1138 = vmatprep.subr.mxu0 0.0
      %1139 = vmatpush1.msra.mxu0 0.0
      %1140 = vmatprep.subr.mxu0 0.0
      %1141 = vmatpush1.msra.mxu0 0.0
      %1142 = vmatprep.subr.mxu0 0.0
      %1143 = vmatpush1.msra.mxu0 0.0
      %1144 = vmatprep.subr.mxu0 0.0
      %1145 = vmatpush1.msra.mxu0 0.0
      %1146 = vmatprep.subr.mxu0 0.0
      %1147 = vmatpush1.msra.mxu0 0.0
      %1148 = vmatprep.subr.mxu0 0.0
      %1149 = vmatpush1.msra.mxu0 0.0
      %1150 = vmatprep.subr.mxu0 0.0
      %1151 = vmatpush1.msra.mxu0 0.0
      %1152 = vmatprep.subr.mxu0 0.0
      %1153 = vmatpush1.msra.mxu0 0.0
      %1154 = vmatprep.subr.mxu0 0.0
      %1155 = vmatpush1.msra.mxu0 0.0
      %1156 = vmatprep.subr.mxu0 0.0
      %1157 = vmatpush1.msra.mxu0 0.0
      %1158 = vmatprep.subr.mxu0 0.0
      %1159 = vmatpush1.msra.mxu0 0.0
      %1160 = vmatprep.subr.mxu0 0.0
      %1161 = vmatpush1.msra.mxu0 0.0
      %1162 = vmatprep.subr.mxu0 0.0
      %1163 = vmatpush1.msra.mxu0 0.0
      %1164 = vmatprep.subr.mxu0 0.0
      %1165 = vmatpush1.msra.mxu0 0.0
      %1166 = vmatprep.subr.mxu0 0.0
      %1167 = vmatpush1.msra.mxu0 0.0
      %1168 = vmatprep.subr.mxu0 0.0
      %1169 = vmatpush1.msra.mxu0 0.0
      %1170 = vmatprep.subr.mxu0 0.0
      %1171 = vmatpush1.msra.mxu0 0.0
      %1172 = vmatprep.subr.mxu0 0.0
      %1173 = vmatpush1.msra.mxu0 0.0
      %1174 = vmatprep.subr.mxu0 0.0
      %1175 = vmatpush1.msra.mxu0 0.0
      %1176 = vmatprep.mubr.f32.mxu0 0.0
      %1177 = vmatmul.mubr.f32.gmra.mrb[0].mxu0 %v1033
      %v1178 = vpop.f32.mrb[0].mxu0
      %v1179 = vadd.f32 0.0, %v1178
      %v1180 = vpop.f32.mrb[0].mxu0
      %1181 = vdwg.mxu0
      %v1182 = vadd.f32 %v1018, %v1108
      %v1183 = vadd.f32 %v1019, %v1110
      %v1184 = vadd.f32 %v1020, %v1179
      %s1185 = scalar_lea.vmem %s1, 48
      %v1186 = vld [vmem:[%s1185] sm:$0x1f]
      %1187 = vrot.lane.b32.xlu0 %v210, 92
      %v1188 = vpop.permute.xlu0 %1187
      %1189 = vrot.lane.b32.xlu0 %v211, 92
      %v1190 = vpop.permute.xlu0 %1189
      %1191 = vrot.lane.b32.xlu0 %v212, 92
      %v1192 = vpop.permute.xlu0 %1191
      %vm1193 = vcmask 752640
      %v1194 = vsel %vm1193, %v1188, %v1190
      %v1195 = vsel %vm1193, %v1190, %v1192
      %v1197 = vsel %vm227, %v1186, 0
      %v1199 = vsel %vm231, %v1194, 0
      %v1201 = vsel %vm231, %v1195, 0
      %v1203 = vsel %vm231, %v1192, 0
      %1205 = vmatprep.subr.mxu0 %v1201
      %1206 = vmatpush1.msra.mxu0 %v1199
      %1207 = vmatprep.subr.mxu0 0.0
      %1208 = vmatpush1.msra.mxu0 0.0
      %1209 = vmatprep.subr.mxu0 0.0
      %1210 = vmatpush1.msra.mxu0 0.0
      %1211 = vmatprep.subr.mxu0 0.0
      %1212 = vmatpush1.msra.mxu0 0.0
      %1213 = vmatprep.subr.mxu0 0.0
      %1214 = vmatpush1.msra.mxu0 0.0
      %1215 = vmatprep.subr.mxu0 0.0
      %1216 = vmatpush1.msra.mxu0 0.0
      %1217 = vmatprep.subr.mxu0 0.0
      %1218 = vmatpush1.msra.mxu0 0.0
      %1219 = vmatprep.subr.mxu0 0.0
      %1220 = vmatpush1.msra.mxu0 0.0
      %1221 = vmatprep.subr.mxu0 0.0
      %1222 = vmatpush1.msra.mxu0 0.0
      %1223 = vmatprep.subr.mxu0 0.0
      %1224 = vmatpush1.msra.mxu0 0.0
      %1225 = vmatprep.subr.mxu0 0.0
      %1226 = vmatpush1.msra.mxu0 0.0
      %1227 = vmatprep.subr.mxu0 0.0
      %1228 = vmatpush1.msra.mxu0 0.0
      %1229 = vmatprep.subr.mxu0 0.0
      %1230 = vmatpush1.msra.mxu0 0.0
      %1231 = vmatprep.subr.mxu0 0.0
      %1232 = vmatpush1.msra.mxu0 0.0
      %1233 = vmatprep.subr.mxu0 0.0
      %1234 = vmatpush1.msra.mxu0 0.0
      %1235 = vmatprep.subr.mxu0 0.0
      %1236 = vmatpush1.msra.mxu0 0.0
      %1237 = vmatprep.subr.mxu0 0.0
      %1238 = vmatpush1.msra.mxu0 0.0
      %1239 = vmatprep.subr.mxu0 0.0
      %1240 = vmatpush1.msra.mxu0 0.0
      %1241 = vmatprep.subr.mxu0 0.0
      %1242 = vmatpush1.msra.mxu0 0.0
      %1243 = vmatprep.subr.mxu0 0.0
      %1244 = vmatpush1.msra.mxu0 0.0
      %1245 = vmatprep.subr.mxu0 0.0
      %1246 = vmatpush1.msra.mxu0 0.0
      %1247 = vmatprep.subr.mxu0 0.0
      %1248 = vmatpush1.msra.mxu0 0.0
      %1249 = vmatprep.subr.mxu0 0.0
      %1250 = vmatpush1.msra.mxu0 0.0
      %1251 = vmatprep.subr.mxu0 0.0
      %1252 = vmatpush1.msra.mxu0 0.0
      %1253 = vmatprep.subr.mxu0 0.0
      %1254 = vmatpush1.msra.mxu0 0.0
      %1255 = vmatprep.subr.mxu0 0.0
      %1256 = vmatpush1.msra.mxu0 0.0
      %1257 = vmatprep.subr.mxu0 0.0
      %1258 = vmatpush1.msra.mxu0 0.0
      %1259 = vmatprep.subr.mxu0 0.0
      %1260 = vmatpush1.msra.mxu0 0.0
      %1261 = vmatprep.subr.mxu0 0.0
      %1262 = vmatpush1.msra.mxu0 0.0
      %1263 = vmatprep.subr.mxu0 0.0
      %1264 = vmatpush1.msra.mxu0 0.0
      %1265 = vmatprep.subr.mxu0 0.0
      %1266 = vmatpush1.msra.mxu0 0.0
      %1267 = vmatprep.subr.mxu0 0.0
      %1268 = vmatpush1.msra.mxu0 0.0
      %1269 = vmatprep.mubr.f32.mxu0 0.0
      %1270 = vmatmul.mubr.f32.gmra.mrb[0].mxu0 %v1197
      %v1271 = vpop.f32.mrb[0].mxu0
      %v1272 = vadd.f32 0.0, %v1271
      %v1273 = vpop.f32.mrb[0].mxu0
      %v1274 = vadd.f32 0.0, %v1273
      %1275 = vdwg.mxu0
      %1276 = vmatprep.subr.mxu0 0.0
      %1277 = vmatpush1.msra.mxu0 %v1203
      %1278 = vmatprep.subr.mxu0 0.0
      %1279 = vmatpush1.msra.mxu0 0.0
      %1280 = vmatprep.subr.mxu0 0.0
      %1281 = vmatpush1.msra.mxu0 0.0
      %1282 = vmatprep.subr.mxu0 0.0
      %1283 = vmatpush1.msra.mxu0 0.0
      %1284 = vmatprep.subr.mxu0 0.0
      %1285 = vmatpush1.msra.mxu0 0.0
      %1286 = vmatprep.subr.mxu0 0.0
      %1287 = vmatpush1.msra.mxu0 0.0
      %1288 = vmatprep.subr.mxu0 0.0
      %1289 = vmatpush1.msra.mxu0 0.0
      %1290 = vmatprep.subr.mxu0 0.0
      %1291 = vmatpush1.msra.mxu0 0.0
      %1292 = vmatprep.subr.mxu0 0.0
      %1293 = vmatpush1.msra.mxu0 0.0
      %1294 = vmatprep.subr.mxu0 0.0
      %1295 = vmatpush1.msra.mxu0 0.0
      %1296 = vmatprep.subr.mxu0 0.0
      %1297 = vmatpush1.msra.mxu0 0.0
      %1298 = vmatprep.subr.mxu0 0.0
      %1299 = vmatpush1.msra.mxu0 0.0
      %1300 = vmatprep.subr.mxu0 0.0
      %1301 = vmatpush1.msra.mxu0 0.0
      %1302 = vmatprep.subr.mxu0 0.0
      %1303 = vmatpush1.msra.mxu0 0.0
      %1304 = vmatprep.subr.mxu0 0.0
      %1305 = vmatpush1.msra.mxu0 0.0
      %1306 = vmatprep.subr.mxu0 0.0
      %1307 = vmatpush1.msra.mxu0 0.0
      %1308 = vmatprep.subr.mxu0 0.0
      %1309 = vmatpush1.msra.mxu0 0.0
      %1310 = vmatprep.subr.mxu0 0.0
      %1311 = vmatpush1.msra.mxu0 0.0
      %1312 = vmatprep.subr.mxu0 0.0
      %1313 = vmatpush1.msra.mxu0 0.0
      %1314 = vmatprep.subr.mxu0 0.0
      %1315 = vmatpush1.msra.mxu0 0.0
      %1316 = vmatprep.subr.mxu0 0.0
      %1317 = vmatpush1.msra.mxu0 0.0
      %1318 = vmatprep.subr.mxu0 0.0
      %1319 = vmatpush1.msra.mxu0 0.0
      %1320 = vmatprep.subr.mxu0 0.0
      %1321 = vmatpush1.msra.mxu0 0.0
      %1322 = vmatprep.subr.mxu0 0.0
      %1323 = vmatpush1.msra.mxu0 0.0
      %1324 = vmatprep.subr.mxu0 0.0
      %1325 = vmatpush1.msra.mxu0 0.0
      %1326 = vmatprep.subr.mxu0 0.0
      %1327 = vmatpush1.msra.mxu0 0.0
      %1328 = vmatprep.subr.mxu0 0.0
      %1329 = vmatpush1.msra.mxu0 0.0
      %1330 = vmatprep.subr.mxu0 0.0
      %1331 = vmatpush1.msra.mxu0 0.0
      %1332 = vmatprep.subr.mxu0 0.0
      %1333 = vmatpush1.msra.mxu0 0.0
      %1334 = vmatprep.subr.mxu0 0.0
      %1335 = vmatpush1.msra.mxu0 0.0
      %1336 = vmatprep.subr.mxu0 0.0
      %1337 = vmatpush1.msra.mxu0 0.0
      %1338 = vmatprep.subr.mxu0 0.0
      %1339 = vmatpush1.msra.mxu0 0.0
      %1340 = vmatprep.mubr.f32.mxu0 0.0
      %1341 = vmatmul.mubr.f32.gmra.mrb[0].mxu0 %v1197
      %v1342 = vpop.f32.mrb[0].mxu0
      %v1343 = vadd.f32 0.0, %v1342
      %v1344 = vpop.f32.mrb[0].mxu0
      %1345 = vdwg.mxu0
      %v1346 = vadd.f32 %v1182, %v1272
      %v1347 = vadd.f32 %v1183, %v1274
      %v1348 = vadd.f32 %v1184, %v1343
      %s1349 = scalar_lea.vmem %s1, 56
      %v1350 = vld [vmem:[%s1349] sm:$0x1f]
      %1351 = vrot.lane.b32.xlu0 %v210, 91
      %v1352 = vpop.permute.xlu0 %1351
      %1353 = vrot.lane.b32.xlu0 %v211, 91
      %v1354 = vpop.permute.xlu0 %1353
      %1355 = vrot.lane.b32.xlu0 %v212, 91
      %v1356 = vpop.permute.xlu0 %1355
      %vm1357 = vcmask 744448
      %v1358 = vsel %vm1357, %v1352, %v1354
      %v1359 = vsel %vm1357, %v1354, %v1356
      %v1361 = vsel %vm227, %v1350, 0
      %v1363 = vsel %vm231, %v1358, 0
      %v1365 = vsel %vm231, %v1359, 0
      %v1367 = vsel %vm231, %v1356, 0
      %1369 = vmatprep.subr.mxu0 %v1365
      %1370 = vmatpush1.msra.mxu0 %v1363
      %1371 = vmatprep.subr.mxu0 0.0
      %1372 = vmatpush1.msra.mxu0 0.0
      %1373 = vmatprep.subr.mxu0 0.0
      %1374 = vmatpush1.msra.mxu0 0.0
      %1375 = vmatprep.subr.mxu0 0.0
      %1376 = vmatpush1.msra.mxu0 0.0
      %1377 = vmatprep.subr.mxu0 0.0
      %1378 = vmatpush1.msra.mxu0 0.0
      %1379 = vmatprep.subr.mxu0 0.0
      %1380 = vmatpush1.msra.mxu0 0.0
      %1381 = vmatprep.subr.mxu0 0.0
      %1382 = vmatpush1.msra.mxu0 0.0
      %1383 = vmatprep.subr.mxu0 0.0
      %1384 = vmatpush1.msra.mxu0 0.0
      %1385 = vmatprep.subr.mxu0 0.0
      %1386 = vmatpush1.msra.mxu0 0.0
      %1387 = vmatprep.subr.mxu0 0.0
      %1388 = vmatpush1.msra.mxu0 0.0
      %1389 = vmatprep.subr.mxu0 0.0
      %1390 = vmatpush1.msra.mxu0 0.0
      %1391 = vmatprep.subr.mxu0 0.0
      %1392 = vmatpush1.msra.mxu0 0.0
      %1393 = vmatprep.subr.mxu0 0.0
      %1394 = vmatpush1.msra.mxu0 0.0
      %1395 = vmatprep.subr.mxu0 0.0
      %1396 = vmatpush1.msra.mxu0 0.0
      %1397 = vmatprep.subr.mxu0 0.0
      %1398 = vmatpush1.msra.mxu0 0.0
      %1399 = vmatprep.subr.mxu0 0.0
      %1400 = vmatpush1.msra.mxu0 0.0
      %1401 = vmatprep.subr.mxu0 0.0
      %1402 = vmatpush1.msra.mxu0 0.0
      %1403 = vmatprep.subr.mxu0 0.0
      %1404 = vmatpush1.msra.mxu0 0.0
      %1405 = vmatprep.subr.mxu0 0.0
      %1406 = vmatpush1.msra.mxu0 0.0
      %1407 = vmatprep.subr.mxu0 0.0
      %1408 = vmatpush1.msra.mxu0 0.0
      %1409 = vmatprep.subr.mxu0 0.0
      %1410 = vmatpush1.msra.mxu0 0.0
      %1411 = vmatprep.subr.mxu0 0.0
      %1412 = vmatpush1.msra.mxu0 0.0
      %1413 = vmatprep.subr.mxu0 0.0
      %1414 = vmatpush1.msra.mxu0 0.0
      %1415 = vmatprep.subr.mxu0 0.0
      %1416 = vmatpush1.msra.mxu0 0.0
      %1417 = vmatprep.subr.mxu0 0.0
      %1418 = vmatpush1.msra.mxu0 0.0
      %1419 = vmatprep.subr.mxu0 0.0
      %1420 = vmatpush1.msra.mxu0 0.0
      %1421 = vmatprep.subr.mxu0 0.0
      %1422 = vmatpush1.msra.mxu0 0.0
      %1423 = vmatprep.subr.mxu0 0.0
      %1424 = vmatpush1.msra.mxu0 0.0
      %1425 = vmatprep.subr.mxu0 0.0
      %1426 = vmatpush1.msra.mxu0 0.0
      %1427 = vmatprep.subr.mxu0 0.0
      %1428 = vmatpush1.msra.mxu0 0.0
      %1429 = vmatprep.subr.mxu0 0.0
      %1430 = vmatpush1.msra.mxu0 0.0
      %1431 = vmatprep.subr.mxu0 0.0
      %1432 = vmatpush1.msra.mxu0 0.0
      %1433 = vmatprep.mubr.f32.mxu0 0.0
      %1434 = vmatmul.mubr.f32.gmra.mrb[0].mxu0 %v1361
      %v1435 = vpop.f32.mrb[0].mxu0
      %v1436 = vadd.f32 0.0, %v1435
      %v1437 = vpop.f32.mrb[0].mxu0
      %v1438 = vadd.f32 0.0, %v1437
      %1439 = vdwg.mxu0
      %1440 = vmatprep.subr.mxu0 0.0
      %1441 = vmatpush1.msra.mxu0 %v1367
      %1442 = vmatprep.subr.mxu0 0.0
      %1443 = vmatpush1.msra.mxu0 0.0
      %1444 = vmatprep.subr.mxu0 0.0
      %1445 = vmatpush1.msra.mxu0 0.0
      %1446 = vmatprep.subr.mxu0 0.0
      %1447 = vmatpush1.msra.mxu0 0.0
      %1448 = vmatprep.subr.mxu0 0.0
      %1449 = vmatpush1.msra.mxu0 0.0
      %1450 = vmatprep.subr.mxu0 0.0
      %1451 = vmatpush1.msra.mxu0 0.0
      %1452 = vmatprep.subr.mxu0 0.0
      %1453 = vmatpush1.msra.mxu0 0.0
      %1454 = vmatprep.subr.mxu0 0.0
      %1455 = vmatpush1.msra.mxu0 0.0
      %1456 = vmatprep.subr.mxu0 0.0
      %1457 = vmatpush1.msra.mxu0 0.0
      %1458 = vmatprep.subr.mxu0 0.0
      %1459 = vmatpush1.msra.mxu0 0.0
      %1460 = vmatprep.subr.mxu0 0.0
      %1461 = vmatpush1.msra.mxu0 0.0
      %1462 = vmatprep.subr.mxu0 0.0
      %1463 = vmatpush1.msra.mxu0 0.0
      %1464 = vmatprep.subr.mxu0 0.0
      %1465 = vmatpush1.msra.mxu0 0.0
      %1466 = vmatprep.subr.mxu0 0.0
      %1467 = vmatpush1.msra.mxu0 0.0
      %1468 = vmatprep.subr.mxu0 0.0
      %1469 = vmatpush1.msra.mxu0 0.0
      %1470 = vmatprep.subr.mxu0 0.0
      %1471 = vmatpush1.msra.mxu0 0.0
      %1472 = vmatprep.subr.mxu0 0.0
      %1473 = vmatpush1.msra.mxu0 0.0
      %1474 = vmatprep.subr.mxu0 0.0
      %1475 = vmatpush1.msra.mxu0 0.0
      %1476 = vmatprep.subr.mxu0 0.0
      %1477 = vmatpush1.msra.mxu0 0.0
      %1478 = vmatprep.subr.mxu0 0.0
      %1479 = vmatpush1.msra.mxu0 0.0
      %1480 = vmatprep.subr.mxu0 0.0
      %1481 = vmatpush1.msra.mxu0 0.0
      %1482 = vmatprep.subr.mxu0 0.0
      %1483 = vmatpush1.msra.mxu0 0.0
      %1484 = vmatprep.subr.mxu0 0.0
      %1485 = vmatpush1.msra.mxu0 0.0
      %1486 = vmatprep.subr.mxu0 0.0
      %1487 = vmatpush1.msra.mxu0 0.0
      %1488 = vmatprep.subr.mxu0 0.0
      %1489 = vmatpush1.msra.mxu0 0.0
      %1490 = vmatprep.subr.mxu0 0.0
      %1491 = vmatpush1.msra.mxu0 0.0
      %1492 = vmatprep.subr.mxu0 0.0
      %1493 = vmatpush1.msra.mxu0 0.0
      %1494 = vmatprep.subr.mxu0 0.0
      %1495 = vmatpush1.msra.mxu0 0.0
      %1496 = vmatprep.subr.mxu0 0.0
      %1497 = vmatpush1.msra.mxu0 0.0
      %1498 = vmatprep.subr.mxu0 0.0
      %1499 = vmatpush1.msra.mxu0 0.0
      %1500 = vmatprep.subr.mxu0 0.0
      %1501 = vmatpush1.msra.mxu0 0.0
      %1502 = vmatprep.subr.mxu0 0.0
      %1503 = vmatpush1.msra.mxu0 0.0
      %1504 = vmatprep.mubr.f32.mxu0 0.0
      %1505 = vmatmul.mubr.f32.gmra.mrb[0].mxu0 %v1361
      %v1506 = vpop.f32.mrb[0].mxu0
      %v1507 = vadd.f32 0.0, %v1506
      %v1508 = vpop.f32.mrb[0].mxu0
      %1509 = vdwg.mxu0
      %v1510 = vadd.f32 %v1346, %v1436
      %v1511 = vadd.f32 %v1347, %v1438
      %v1512 = vadd.f32 %v1348, %v1507
      %s1513 = scalar_lea.vmem %s1, 64
      %v1514 = vld [vmem:[%s1513] sm:$0x1f]
      %1515 = vrot.lane.b32.xlu0 %v210, 90
      %v1516 = vpop.permute.xlu0 %1515
      %1517 = vrot.lane.b32.xlu0 %v211, 90
      %v1518 = vpop.permute.xlu0 %1517
      %1519 = vrot.lane.b32.xlu0 %v212, 90
      %v1520 = vpop.permute.xlu0 %1519
      %vm1521 = vcmask 736256
      %v1522 = vsel %vm1521, %v1516, %v1518
      %v1523 = vsel %vm1521, %v1518, %v1520
      %v1525 = vsel %vm227, %v1514, 0
      %v1527 = vsel %vm231, %v1522, 0
      %v1529 = vsel %vm231, %v1523, 0
      %v1531 = vsel %vm231, %v1520, 0
      %1533 = vmatprep.subr.mxu0 %v1529
      %1534 = vmatpush1.msra.mxu0 %v1527
      %1535 = vmatprep.subr.mxu0 0.0
      %1536 = vmatpush1.msra.mxu0 0.0
      %1537 = vmatprep.subr.mxu0 0.0
      %1538 = vmatpush1.msra.mxu0 0.0
      %1539 = vmatprep.subr.mxu0 0.0
      %1540 = vmatpush1.msra.mxu0 0.0
      %1541 = vmatprep.subr.mxu0 0.0
      %1542 = vmatpush1.msra.mxu0 0.0
      %1543 = vmatprep.subr.mxu0 0.0
      %1544 = vmatpush1.msra.mxu0 0.0
      %1545 = vmatprep.subr.mxu0 0.0
      %1546 = vmatpush1.msra.mxu0 0.0
      %1547 = vmatprep.subr.mxu0 0.0
      %1548 = vmatpush1.msra.mxu0 0.0
      %1549 = vmatprep.subr.mxu0 0.0
      %1550 = vmatpush1.msra.mxu0 0.0
      %1551 = vmatprep.subr.mxu0 0.0
      %1552 = vmatpush1.msra.mxu0 0.0
      %1553 = vmatprep.subr.mxu0 0.0
      %1554 = vmatpush1.msra.mxu0 0.0
      %1555 = vmatprep.subr.mxu0 0.0
      %1556 = vmatpush1.msra.mxu0 0.0
      %1557 = vmatprep.subr.mxu0 0.0
      %1558 = vmatpush1.msra.mxu0 0.0
      %1559 = vmatprep.subr.mxu0 0.0
      %1560 = vmatpush1.msra.mxu0 0.0
      %1561 = vmatprep.subr.mxu0 0.0
      %1562 = vmatpush1.msra.mxu0 0.0
      %1563 = vmatprep.subr.mxu0 0.0
      %1564 = vmatpush1.msra.mxu0 0.0
      %1565 = vmatprep.subr.mxu0 0.0
      %1566 = vmatpush1.msra.mxu0 0.0
      %1567 = vmatprep.subr.mxu0 0.0
      %1568 = vmatpush1.msra.mxu0 0.0
      %1569 = vmatprep.subr.mxu0 0.0
      %1570 = vmatpush1.msra.mxu0 0.0
      %1571 = vmatprep.subr.mxu0 0.0
      %1572 = vmatpush1.msra.mxu0 0.0
      %1573 = vmatprep.subr.mxu0 0.0
      %1574 = vmatpush1.msra.mxu0 0.0
      %1575 = vmatprep.subr.mxu0 0.0
      %1576 = vmatpush1.msra.mxu0 0.0
      %1577 = vmatprep.subr.mxu0 0.0
      %1578 = vmatpush1.msra.mxu0 0.0
      %1579 = vmatprep.subr.mxu0 0.0
      %1580 = vmatpush1.msra.mxu0 0.0
      %1581 = vmatprep.subr.mxu0 0.0
      %1582 = vmatpush1.msra.mxu0 0.0
      %1583 = vmatprep.subr.mxu0 0.0
      %1584 = vmatpush1.msra.mxu0 0.0
      %1585 = vmatprep.subr.mxu0 0.0
      %1586 = vmatpush1.msra.mxu0 0.0
      %1587 = vmatprep.subr.mxu0 0.0
      %1588 = vmatpush1.msra.mxu0 0.0
      %1589 = vmatprep.subr.mxu0 0.0
      %1590 = vmatpush1.msra.mxu0 0.0
      %1591 = vmatprep.subr.mxu0 0.0
      %1592 = vmatpush1.msra.mxu0 0.0
      %1593 = vmatprep.subr.mxu0 0.0
      %1594 = vmatpush1.msra.mxu0 0.0
      %1595 = vmatprep.subr.mxu0 0.0
      %1596 = vmatpush1.msra.mxu0 0.0
      %1597 = vmatprep.mubr.f32.mxu0 0.0
      %1598 = vmatmul.mubr.f32.gmra.mrb[0].mxu0 %v1525
      %v1599 = vpop.f32.mrb[0].mxu0
      %v1600 = vadd.f32 0.0, %v1599
      %v1601 = vpop.f32.mrb[0].mxu0
      %v1602 = vadd.f32 0.0, %v1601
      %1603 = vdwg.mxu0
      %1604 = vmatprep.subr.mxu0 0.0
      %1605 = vmatpush1.msra.mxu0 %v1531
      %1606 = vmatprep.subr.mxu0 0.0
      %1607 = vmatpush1.msra.mxu0 0.0
      %1608 = vmatprep.subr.mxu0 0.0
      %1609 = vmatpush1.msra.mxu0 0.0
      %1610 = vmatprep.subr.mxu0 0.0
      %1611 = vmatpush1.msra.mxu0 0.0
      %1612 = vmatprep.subr.mxu0 0.0
      %1613 = vmatpush1.msra.mxu0 0.0
      %1614 = vmatprep.subr.mxu0 0.0
      %1615 = vmatpush1.msra.mxu0 0.0
      %1616 = vmatprep.subr.mxu0 0.0
      %1617 = vmatpush1.msra.mxu0 0.0
      %1618 = vmatprep.subr.mxu0 0.0
      %1619 = vmatpush1.msra.mxu0 0.0
      %1620 = vmatprep.subr.mxu0 0.0
      %1621 = vmatpush1.msra.mxu0 0.0
      %1622 = vmatprep.subr.mxu0 0.0
      %1623 = vmatpush1.msra.mxu0 0.0
      %1624 = vmatprep.subr.mxu0 0.0
      %1625 = vmatpush1.msra.mxu0 0.0
      %1626 = vmatprep.subr.mxu0 0.0
      %1627 = vmatpush1.msra.mxu0 0.0
      %1628 = vmatprep.subr.mxu0 0.0
      %1629 = vmatpush1.msra.mxu0 0.0
      %1630 = vmatprep.subr.mxu0 0.0
      %1631 = vmatpush1.msra.mxu0 0.0
      %1632 = vmatprep.subr.mxu0 0.0
      %1633 = vmatpush1.msra.mxu0 0.0
      %1634 = vmatprep.subr.mxu0 0.0
      %1635 = vmatpush1.msra.mxu0 0.0
      %1636 = vmatprep.subr.mxu0 0.0
      %1637 = vmatpush1.msra.mxu0 0.0
      %1638 = vmatprep.subr.mxu0 0.0
      %1639 = vmatpush1.msra.mxu0 0.0
      %1640 = vmatprep.subr.mxu0 0.0
      %1641 = vmatpush1.msra.mxu0 0.0
      %1642 = vmatprep.subr.mxu0 0.0
      %1643 = vmatpush1.msra.mxu0 0.0
      %1644 = vmatprep.subr.mxu0 0.0
      %1645 = vmatpush1.msra.mxu0 0.0
      %1646 = vmatprep.subr.mxu0 0.0
      %1647 = vmatpush1.msra.mxu0 0.0
      %1648 = vmatprep.subr.mxu0 0.0
      %1649 = vmatpush1.msra.mxu0 0.0
      %1650 = vmatprep.subr.mxu0 0.0
      %1651 = vmatpush1.msra.mxu0 0.0
      %1652 = vmatprep.subr.mxu0 0.0
      %1653 = vmatpush1.msra.mxu0 0.0
      %1654 = vmatprep.subr.mxu0 0.0
      %1655 = vmatpush1.msra.mxu0 0.0
      %1656 = vmatprep.subr.mxu0 0.0
      %1657 = vmatpush1.msra.mxu0 0.0
      %1658 = vmatprep.subr.mxu0 0.0
      %1659 = vmatpush1.msra.mxu0 0.0
      %1660 = vmatprep.subr.mxu0 0.0
      %1661 = vmatpush1.msra.mxu0 0.0
      %1662 = vmatprep.subr.mxu0 0.0
      %1663 = vmatpush1.msra.mxu0 0.0
      %1664 = vmatprep.subr.mxu0 0.0
      %1665 = vmatpush1.msra.mxu0 0.0
      %1666 = vmatprep.subr.mxu0 0.0
      %1667 = vmatpush1.msra.mxu0 0.0
      %1668 = vmatprep.mubr.f32.mxu0 0.0
      %1669 = vmatmul.mubr.f32.gmra.mrb[0].mxu0 %v1525
      %v1670 = vpop.f32.mrb[0].mxu0
      %v1671 = vadd.f32 0.0, %v1670
      %v1672 = vpop.f32.mrb[0].mxu0
      %1673 = vdwg.mxu0
      %v1674 = vadd.f32 %v1510, %v1600
      %v1675 = vadd.f32 %v1511, %v1602
      %v1676 = vadd.f32 %v1512, %v1671
      %vm1677 = vcmp.eq.f32.partialorder %v1674, 0.0
      %vm1678 = vcmp.eq.f32.partialorder %v1675, 0.0
      %vm1679 = vcmp.eq.f32.partialorder %v1676, 0.0
      %v1680 = vsel %vm1677, 1.0, %v1674
      %v1681 = vsel %vm1678, 1.0, %v1675
      %v1682 = vsel %vm1679, 1.0, %v1676
      %v1683 = vrcp.pop %v1680
      %v1684 = vmul.f32 1.0, %v1683
      %v1685 = vrcp.pop %v1681
      %v1686 = vmul.f32 1.0, %v1685
      %v1687 = vrcp.pop %v1682
      %v1688 = vmul.f32 1.0, %v1687
      %v1689 = vlaneseq
      %v1690 = vshrl.u32 %v1689, 7
      %v1691 = vsub.s32 4, %v1690
      %v1692 = vrot.slane %v1684, %v1691
      %v1693 = vlaneseq
      %v1694 = vshrl.u32 %v1693, 7
      %v1695 = vsub.s32 4, %v1694
      %v1696 = vrot.slane %v1686, %v1695
      %v1697 = vlaneseq
      %v1698 = vshrl.u32 %v1697, 7
      %v1699 = vsub.s32 4, %v1698
      %v1700 = vrot.slane %v1688, %v1699
      %v1701 = vmul.f32 %v1674, %v1692
      %v1702 = vmul.f32 %v1675, %v1696
      %v1703 = vmul.f32 %v1676, %v1700
      %v1704 = vld [vmem:[%s2] sm:$0xf]
      %1706 = vset.pattern.permute.xlu0 0
      %1707 = vperm.xlu0 %1706, %v1704
      %v1708 = vpop.permute.xlu0 %1707
      %v1710 = vadd.f32 %v1701, %v1708
      %v1711 = vadd.f32 %v1702, %v1708
      %v1712 = vadd.f32 %v1703, %v1708
      %v1713 = vsel %vm1677, 1, 0
      %v1714 = vsel %vm1678, 1, 0
      %v1715 = vsel %vm1679, 1, 0
      %v1716 = vlaneseq
      %v1717 = vshrl.u32 %v1716, 7
      %v1718 = vsub.s32 4, %v1717
      %v1719 = vrot.slane %v1713, %v1718
      %v1720 = vlaneseq
      %v1721 = vshrl.u32 %v1720, 7
      %v1722 = vsub.s32 4, %v1721
      %v1723 = vrot.slane %v1714, %v1722
      %v1724 = vlaneseq
      %v1725 = vshrl.u32 %v1724, 7
      %v1726 = vsub.s32 4, %v1725
      %v1727 = vrot.slane %v1715, %v1726
      %vm1728 = vcmp.eq.s32.totalorder %v1719, 1
      %vm1729 = vcmp.eq.s32.totalorder %v1723, 1
      %vm1730 = vcmp.eq.s32.totalorder %v1727, 1
      %v1731 = vsel %vm1728, 0.0, %v1710
      %v1732 = vsel %vm1729, 0.0, %v1711
      %v1733 = vsel %vm1730, 0.0, %v1712
      %v1736 = vcombine.low %v1731, %v1732
      %1738 = vst [vmem:[%s204] sm:$0xff] %v1736
      %vm1739 = vcmask 257024
      %1740 = vst.msk [vmem:[%s204 + $0x8] sm:$0xf] %vm1739, %v1733
      %v1741 = vsel %vm1677, 0.0, 1.0
      %v1742 = vsel %vm1678, 0.0, 1.0
      %v1743 = vsel %vm1679, 0.0, 1.0
      %v1747 = vcombine.high %v1741, %v1742
      %v1748 = vcombine.high %v1743, %v1743
      %v1750 = vunpack.c.l.s4 1966171168
      %v1751 = vunpack.c.0.s8 %v1750
      %v1752 = vlaneseq
      %v1753 = vshrl.u32 %v1752, 7
      %v1754 = vsub.s32 %v1751, %v1753
      %v1755 = vrot.slane %v1747, %v1754
      %v1757 = vunpack.c.l.s4 1966171168
      %v1758 = vunpack.c.0.s8 %v1757
      %v1759 = vlaneseq
      %v1760 = vshrl.u32 %v1759, 7
      %v1761 = vsub.s32 %v1758, %v1760
      %v1762 = vrot.slane %v1748, %v1761
      %v1763 = vcombine.low %v1755, %v1762
      %v1765 = vunpack.c.l.s4 1966171168
      %v1766 = vunpack.c.0.s8 %v1765
      %v1767 = vlaneseq
      %v1768 = vshrl.u32 %v1767, 7
      %v1769 = vsub.s32 %v1766, %v1768
      %v1770 = vrot.slane %v1763, %v1769
      %v1772 = vlaneseq
      %vm1773 = vcmp.ge.s32.totalorder %v1772, 0
      %vm1774 = vcmp.lt.s32.totalorder %v1772, 288
      %vm1775 = vmand %vm1773, %vm1774
      %1776 = vst.msk [vmem:[%s208] sm:$0x7] %vm1775, %v1770
      %p1777 = scmp.lt.s32.totalorder %s16, 1
      %s1778 = scalar_select %p1777, %s16, 1
      %s1779 = smul.addr %s1778, 3
      %s1780 = smul.addr %s1779, 4
      %s1781 = scalar_lea.vmem %s3, %s1780
      %p1782 = scmp.lt.s32.totalorder %s16, 1
      %s1783 = scalar_select %p1782, %s16, 1
      %s1784 = smul.addr %s1783, 3
      %s1785 = scalar_lea.vmem %s4, %s1784
      // Predicated region
      $region33: #{partial_conv.1} parent=31 // pred_check
        %p1786 = pneg %p102
      $region34: #{partial_conv.1} parent=31 // pred_check_branch
        %1788 = sbr.rel (%p1786) target = $region36
      $region35: #{partial_conv.1} parent=31 // pred_region
        _
      $region36: #{partial_conv.1} parent=31 // pred_fallthru
        _
      // Predicated region
      $region37: #{partial_conv.1} parent=31 // pred_check
        %p1789 = pneg %p128
      $region38: #{partial_conv.1} parent=31 // pred_check_branch
        %1791 = sbr.rel (%p1789) target = $region40
      $region39: #{partial_conv.1} parent=31 // pred_region
        _
      $region40: #{partial_conv.1} parent=31 // pred_fallthru
        _
    $region32: #{partial_conv.1} parent=5 // pred_fallthru
      _
    %p1792 = scmp.le.s32.totalorder 2, %s11
    // Predicated region
    $region41: #{partial_conv.1} parent=5 // pred_check
      %p1793 = pneg %p1792
    $region42: #{partial_conv.1} parent=5 // pred_check_branch
      %1795 = sbr.rel (%p1793) target = $region44
    $region43: #{partial_conv.1} parent=5 // pred_region
      %s1796 = ssub.s32 %s11, 2
      // Predicated region
      $region45: #{partial_conv.1} parent=43 // pred_check
        %p1797 = pneg %p108
      $region46: #{partial_conv.1} parent=43 // pred_check_branch
        %1799 = sbr.rel (%p1797) target = $region48
      $region47: #{partial_conv.1} parent=43 // pred_region
        %p1800 = scmp.lt.s32.totalorder %s17, 1
        %s1801 = scalar_select %p1800, %s17, 1
        %s1802 = smul.addr %s1801, 3
        %s1803 = smul.addr %s1802, 4
        %s1804 = scalar_lea.vmem %s3, %s1803
      $region48: #{partial_conv.1} parent=43 // pred_fallthru
        _
      // Predicated region
      $region49: #{partial_conv.1} parent=43 // pred_check
        %p1805 = pneg %p134
      $region50: #{partial_conv.1} parent=43 // pred_check_branch
        %1807 = sbr.rel (%p1805) target = $region52
      $region51: #{partial_conv.1} parent=43 // pred_region
        %p1808 = scmp.lt.s32.totalorder %s17, 1
        %s1809 = scalar_select %p1808, %s17, 1
        %s1810 = smul.addr %s1809, 3
        %s1811 = scalar_lea.vmem %s4, %s1810
      $region52: #{partial_conv.1} parent=43 // pred_fallthru
        _
    $region44: #{partial_conv.1} parent=5 // pred_fallthru
      _
  $region6: #{partial_conv.1} parent=0 // loop_footer
    %s15 = sadd.s32 1, %s11
  $region7: #{partial_conv.1} parent=0 // loop_footer_branch
    %10 = sbr.rel target = $region3
  $region8: #{partial_conv.1} parent=0 // loop_exit
    _

</llo_original>
